<compile_context>
chip_gen: v5e
topology: v5e:2x2
jax: 0.10.0
libtpu: 0.0.40
codegen_flags: <defaults>
</compile_context>

<pallas_src>
import functools

import jax
import jax.numpy as jnp
from jax import lax
from jax.experimental import pallas as pl
from jax.experimental.pallas import tpu as pltpu


def cal_linear_num(layer_num, num_timesteps_input):
    return num_timesteps_input + 4 * (2 ** layer_num - 1)


def _round_up(n, m):
    return ((n + m - 1) // m) * m


# ----------------------------------------------------------------------------
# Fused Pallas kernel: all dilated convs + ReLUs + the final Linear.
# ----------------------------------------------------------------------------
def _tcn_fused_kernel(x_ref, *rest, dilations, kernel_size, t_buf, left0, r_valid):
    """Fused TCN forward for one tile of M = B*N rows.

    x_ref : (M_TILE * t_buf, C_in)  zero-padded temporal working buffer;
            merged row r = m * t_buf + t, valid data at t in [left0, r_valid).
    rest  : per-conv (w (K*C_in, C_out), b (1, C_out)) pairs, then
            linear_wT (Dout, t_buf), linear_b (Dout, 1), then o_ref.
    o_ref : (M_TILE, Dout, C_last).
    """
    o_ref = rest[-1]
    lin_wt_ref = rest[-3]
    lin_b_ref = rest[-2]
    conv_refs = rest[:-3]

    k = kernel_size
    n_rows = x_ref.shape[0]
    m_tile = n_rows // t_buf
    pad_r = (k - 1) * max(dilations)      # zero tail keeps tap slices in-bounds

    # Per-row local time index (built once): used to re-zero everything outside
    # the valid temporal window after each conv.  t_buf % 8 == 0 so the merge
    # reshape is a tile-aligned layout no-op.
    t_idx = lax.broadcasted_iota(jnp.int32, (m_tile, t_buf, 1), 1)
    t_idx = t_idx.reshape(n_rows, 1)

    x = x_ref[...].astype(jnp.float32)    # (n_rows, C_in), f32 accumulation
    left = left0
    ci = 0
    for d in dilations:
        for _ in range(2):                # conv -> relu -> conv -> relu per level
            w = conv_refs[ci][...].astype(jnp.float32)       # (k*C_prev, C_out)
            b = conv_refs[ci + 1][...].astype(jnp.float32)   # (1, C_out)
            ci += 2
            c_prev = x.shape[1]

            # Zero tail so every dilated tap below is a static, in-bounds slice
            # (rows beyond a block's end read the next block's zero margin).
            x_ext = jnp.concatenate(
                [x, jnp.zeros((pad_r, c_prev), jnp.float32)], axis=0)

            # Tap fusion: gather the k dilated taps along the channel axis and
            # issue ONE MXU matmul with contraction width k*C_prev, instead of
            # k narrow matmuls + serial adds.
            taps = [x_ext[j * d: j * d + n_rows, :] for j in range(k)]
            xk = jnp.concatenate(taps, axis=-1)              # (n_rows, k*C_prev)
            y = jnp.dot(xk, w, preferred_element_type=jnp.float32) + b
            y = jnp.maximum(y, 0.0)

            # The conv grows the valid window by 2*d (to the left in buffer
            # coordinates).  Re-zero all other rows so they keep serving as
            # exact zero padding for the next conv.
            left -= 2 * d
            x = jnp.where((t_idx >= left) & (t_idx < r_valid), y, 0.0)

    # Fused final Linear over the temporal axis:
    #   out[m, o, c] = sum_t W[t, o] * x[m, t, c]
    # (the weight is zero-padded over the t_buf - T_final masked rows so they
    # contribute exactly zero).  This removes the wrapper-level HBM transpose +
    # extra pallas_call of the unfused version.
    c_last = x.shape[1]
    x3 = x.reshape(m_tile, t_buf, c_last)                    # aligned split
    wt = lin_wt_ref[...].astype(jnp.float32)                 # (Dout, t_buf)
    d_out = wt.shape[0]
    wt_b = jnp.broadcast_to(wt[None, :, :], (m_tile, d_out, t_buf))
    y = lax.dot_general(
        wt_b, x3, (((2,), (1,)), ((0,), (0,))),
        preferred_element_type=jnp.float32)                  # (m_tile, Dout, c_last)
    y = y + lin_b_ref[...].astype(jnp.float32)               # (Dout, 1) broadcasts
    o_ref[...] = y.astype(o_ref.dtype)


# ----------------------------------------------------------------------------
# Wrapper
# ----------------------------------------------------------------------------
def tcn_forward(X, params, channel_size, kernel_size=3, m_tile=None,
                compute_dtype=jnp.float32):
    """X: (B, N, T, F) -> (B, N, C_last, out_channels), matching TCN.forward."""
    B, N, T, F = X.shape
    L = len(channel_size)
    dilations = tuple(2 ** i for i in range(L))
    growth = sum(4 * d for d in dilations)       # == 4 * (2**L - 1)
    t_final = T + growth                         # == cal_linear_num(L, T)
    t_buf = _round_up(t_final, 8)                # sublane-aligned working width
    c_last = channel_size[-1]

    lin_w = params["linear_w"]                   # (t_final, Dout)
    lin_b = params["linear_b"]                   # (Dout,)
    d_out = lin_w.shape[1]

    M = B * N
    if m_tile is None:
        # >=2 grid blocks when possible so both v7x TensorCores get work; cap
        # block rows so the per-step VMEM footprint stays tiny on every gen.
        m_tile = max(1, min(128, -(-M // 2)))
    m_pad = _round_up(M, m_tile)

    # Build the zero-padded temporal working buffer ONCE (replaces the per-conv
    # jnp.pad + HBM round trips of the unfused version).  Valid data sits at
    # rows [growth, growth + T) of every t_buf-row block; padded batch rows are
    # zero and sliced off at the end.
    x = X.reshape(M, T, F).astype(compute_dtype)
    x = jnp.pad(x, ((0, m_pad - M), (growth, t_buf - t_final), (0, 0)))
    x2d = x.reshape(m_pad * t_buf, F)

    # Conv weights reshaped for tap-fused matmuls; grid-invariant BlockSpecs
    # (constant index_map) so they are loaded once, not re-fetched per step.
    conv_inputs, conv_specs = [], []
    for (w1, b1, w2, b2) in params["blocks"]:
        for w, b in ((w1, b1), (w2, b2)):
            kk, c_in, c_out = w.shape
            conv_inputs.append(w.reshape(kk * c_in, c_out).astype(compute_dtype))
            conv_inputs.append(b.reshape(1, c_out).astype(compute_dtype))
            conv_specs.append(pl.BlockSpec((kk * c_in, c_out), lambda i: (0, 0)))
            conv_specs.append(pl.BlockSpec((1, c_out), lambda i: (0, 0)))

    # Linear weight transposed and zero-padded to t_buf columns; bias shaped
    # (Dout, 1) so it broadcasts against the (M_TILE, Dout, C_last) result.
    lin_wt = jnp.pad(lin_w.T, ((0, 0), (0, t_buf - t_final))).astype(compute_dtype)
    lin_b2 = lin_b.reshape(d_out, 1).astype(compute_dtype)

    kernel = functools.partial(
        _tcn_fused_kernel, dilations=dilations, kernel_size=kernel_size,
        t_buf=t_buf, left0=growth, r_valid=t_final)

    out = pl.pallas_call(
        kernel,
        out_shape=jax.ShapeDtypeStruct((m_pad, d_out, c_last), jnp.float32),
        grid=(m_pad // m_tile,),
        in_specs=[pl.BlockSpec((m_tile * t_buf, F), lambda i: (i, 0))]
                 + conv_specs
                 + [pl.BlockSpec((d_out, t_buf), lambda i: (0, 0)),
                    pl.BlockSpec((d_out, 1), lambda i: (0, 0))],
        out_specs=pl.BlockSpec((m_tile, d_out, c_last), lambda i: (i, 0, 0)),
        compiler_params=pltpu.CompilerParams(
            dimension_semantics=("parallel",),
            vmem_limit_bytes=32 * 1024 * 1024),   # safe on v5e/v6e/v7x (64 MiB/TC)
    )(x2d, *conv_inputs, lin_wt, lin_b2)

    out = out[:M]
    # PyTorch: (B, C_last, N, out) --permute(0,2,1,3)--> (B, N, C_last, out).
    # Kernel emits (M, out, C_last); only this tiny final transpose remains
    # outside the kernel (the large intermediate transpose is fused away).
    return out.reshape(B, N, d_out, c_last).transpose(0, 1, 3, 2)


# ----------------------------------------------------------------------------
# Deterministic synthetic parameters
# ----------------------------------------------------------------------------
def init_tcn_params(key, in_channels, out_channels, channel_size,
                    layer_num, num_timesteps_input, kernel_size=3):
    params = {"blocks": []}
    c_prev = in_channels
    for c_out in channel_size:
        key, k1, k2, k3, k4 = jax.random.split(key, 5)
        # conv weights stored as (K, C_in, C_out) for the channels-last kernel
        w1 = 0.1 * jax.random.normal(k1, (kernel_size, c_prev, c_out), jnp.float32)
        b1 = 0.1 * jax.random.normal(k2, (c_out,), jnp.float32)
        w2 = 0.1 * jax.random.normal(k3, (kernel_size, c_out, c_out), jnp.float32)
        b2 = 0.1 * jax.random.normal(k4, (c_out,), jnp.float32)
        params["blocks"].append((w1, b1, w2, b2))
        c_prev = c_out

    linear_num = cal_linear_num(layer_num, num_timesteps_input)
    key, k5, k6 = jax.random.split(key, 3)
    # nn.Linear(linear_num, out_channels): stored transposed (Din, Dout)
    params["linear_w"] = 0.1 * jax.random.normal(k5, (linear_num, out_channels), jnp.float32)
    params["linear_b"] = 0.1 * jax.random.normal(k6, (out_channels,), jnp.float32)
    # TODO(synk): self.linear2 = nn.Linear(4, 3) is defined but never used in forward().
    return params


# ----------------------------------------------------------------------------
if __name__ == "__main__":
    B, N, T, F = 2, 4, 8, 2            # batch, nodes, num_timesteps_input, in_channels
    channel_size = [8, 8]
    layer_num = len(channel_size)
    out_channels = 3
    kernel_size = 3

    key = jax.random.PRNGKey(0)
    key, kx = jax.random.split(key)
    X = jax.random.normal(kx, (B, N, T, F), jnp.float32)

    params = init_tcn_params(key, F, out_channels, channel_size,
                             layer_num, T, kernel_size)

    out = tcn_forward(X, params, channel_size, kernel_size)
    out = jax.block_until_ready(out)

    expected = (B, N, channel_size[-1], out_channels)
    assert out.shape == expected, (out.shape, expected)
    assert bool(jnp.all(jnp.isfinite(out)))
    print("KERNEL_OK")
</pallas_src>

<mosaic_0001>
module attributes {stable_mosaic.version = 11 : i64} {
  func.func @_tcn_fused_kernel(%arg0: i32, %arg1: memref<96x2xf32, #tpu.memory_space<vmem>>, %arg2: memref<6x8xf32, #tpu.memory_space<vmem>>, %arg3: memref<1x8xf32, #tpu.memory_space<vmem>>, %arg4: memref<24x8xf32, #tpu.memory_space<vmem>>, %arg5: memref<1x8xf32, #tpu.memory_space<vmem>>, %arg6: memref<24x8xf32, #tpu.memory_space<vmem>>, %arg7: memref<1x8xf32, #tpu.memory_space<vmem>>, %arg8: memref<24x8xf32, #tpu.memory_space<vmem>>, %arg9: memref<1x8xf32, #tpu.memory_space<vmem>>, %arg10: memref<3x24xf32, #tpu.memory_space<vmem>>, %arg11: memref<3x1xf32, #tpu.memory_space<vmem>>, %arg12: memref<4x3x8xf32, #tpu.memory_space<vmem>>) attributes {dimension_semantics = [#tpu.dimension_semantics<parallel>], iteration_bounds = array<i64: 2>, scalar_prefetch = 0 : i64, scratch_operands = 0 : i64, tpu.core_type = #tpu.core_type<tc>, window_params = [{transform_indices = @transform_0, window_bounds = array<i64: 96, 2>}, {pipeline_mode = #tpu.pipeline_mode<synchronous>, transform_indices = @transform_1, window_bounds = array<i64: 6, 8>}, {pipeline_mode = #tpu.pipeline_mode<synchronous>, transform_indices = @transform_2, window_bounds = array<i64: 1, 8>}, {pipeline_mode = #tpu.pipeline_mode<synchronous>, transform_indices = @transform_3, window_bounds = array<i64: 24, 8>}, {pipeline_mode = #tpu.pipeline_mode<synchronous>, transform_indices = @transform_4, window_bounds = array<i64: 1, 8>}, {pipeline_mode = #tpu.pipeline_mode<synchronous>, transform_indices = @transform_5, window_bounds = array<i64: 24, 8>}, {pipeline_mode = #tpu.pipeline_mode<synchronous>, transform_indices = @transform_6, window_bounds = array<i64: 1, 8>}, {pipeline_mode = #tpu.pipeline_mode<synchronous>, transform_indices = @transform_7, window_bounds = array<i64: 24, 8>}, {pipeline_mode = #tpu.pipeline_mode<synchronous>, transform_indices = @transform_8, window_bounds = array<i64: 1, 8>}, {pipeline_mode = #tpu.pipeline_mode<synchronous>, transform_indices = @transform_9, window_bounds = array<i64: 3, 24>}, {pipeline_mode = #tpu.pipeline_mode<synchronous>, transform_indices = @transform_10, window_bounds = array<i64: 3, 1>}, {transform_indices = @transform_11, window_bounds = array<i64: 4, 3, 8>}]} {
    %0 = tpu.iota {dimensions = array<i32: 1>} : vector<4x24x1xi32>
    %1 = vector.shape_cast %0 : vector<4x24x1xi32> to vector<96x1xi32>
    %c0 = arith.constant 0 : index
    %c0_0 = arith.constant 0 : index
    %2 = vector.load %arg1[%c0, %c0_0] : memref<96x2xf32, #tpu.memory_space<vmem>>, vector<96x2xf32>
    %c0_1 = arith.constant 0 : index
    %c0_2 = arith.constant 0 : index
    %3 = vector.load %arg2[%c0_1, %c0_2] : memref<6x8xf32, #tpu.memory_space<vmem>>, vector<6x8xf32>
    %c0_3 = arith.constant 0 : index
    %c0_4 = arith.constant 0 : index
    %4 = vector.load %arg3[%c0_3, %c0_4] : memref<1x8xf32, #tpu.memory_space<vmem>>, vector<1x8xf32>
    %cst = arith.constant 0.000000e+00 : f32
    %5 = vector.broadcast %cst : f32 to vector<4x2xf32>
    %6 = tpu.concatenate %2, %5 in 0 : vector<96x2xf32>, vector<4x2xf32> -> vector<100x2xf32>
    %7 = vector.extract_strided_slice %6 {offsets = [0, 0], sizes = [96, 2], strides = [1, 1]} : vector<100x2xf32> to vector<96x2xf32>
    %8 = vector.extract_strided_slice %6 {offsets = [1, 0], sizes = [96, 2], strides = [1, 1]} : vector<100x2xf32> to vector<96x2xf32>
    %9 = vector.extract_strided_slice %6 {offsets = [2, 0], sizes = [96, 2], strides = [1, 1]} : vector<100x2xf32> to vector<96x2xf32>
    %10 = tpu.concatenate %7, %8, %9 in 1 : vector<96x2xf32>, vector<96x2xf32>, vector<96x2xf32> -> vector<96x6xf32>
    %cst_5 = arith.constant dense<0.000000e+00> : vector<96x8xf32>
    %11 = tpu.matmul %10, %3, %cst_5 {dimension_numbers = #tpu.dot_dimension_numbers<[1], [0], [0], [1], [0, 0, 1, 1], [], []>} : vector<96x6xf32>, vector<6x8xf32>, vector<96x8xf32> -> vector<96x8xf32>
    %12 = vector.broadcast %4 : vector<1x8xf32> to vector<96x8xf32>
    %13 = arith.addf %11, %12 : vector<96x8xf32>
    %cst_6 = arith.constant 0.000000e+00 : f32
    %14 = vector.broadcast %cst_6 : f32 to vector<96x8xf32>
    %15 = arith.maximumf %13, %14 : vector<96x8xf32>
    %c10_i32 = arith.constant 10 : i32
    %16 = vector.broadcast %c10_i32 : i32 to vector<96x1xi32>
    %17 = arith.cmpi sge, %1, %16 : vector<96x1xi32>
    %c20_i32 = arith.constant 20 : i32
    %18 = vector.broadcast %c20_i32 : i32 to vector<96x1xi32>
    %19 = arith.cmpi slt, %1, %18 : vector<96x1xi32>
    %20 = arith.andi %17, %19 : vector<96x1xi1>
    %cst_7 = arith.constant 0.000000e+00 : f32
    %21 = vector.shape_cast %20 : vector<96x1xi1> to vector<96x1xi1>
    %22 = vector.broadcast %21 : vector<96x1xi1> to vector<96x8xi1>
    %23 = vector.broadcast %cst_7 : f32 to vector<96x8xf32>
    %24 = arith.select %22, %15, %23 : vector<96x8xi1>, vector<96x8xf32>
    %c0_8 = arith.constant 0 : index
    %c0_9 = arith.constant 0 : index
    %25 = vector.load %arg4[%c0_8, %c0_9] : memref<24x8xf32, #tpu.memory_space<vmem>>, vector<24x8xf32>
    %c0_10 = arith.constant 0 : index
    %c0_11 = arith.constant 0 : index
    %26 = vector.load %arg5[%c0_10, %c0_11] : memref<1x8xf32, #tpu.memory_space<vmem>>, vector<1x8xf32>
    %cst_12 = arith.constant 0.000000e+00 : f32
    %27 = vector.broadcast %cst_12 : f32 to vector<4x8xf32>
    %28 = tpu.concatenate %24, %27 in 0 : vector<96x8xf32>, vector<4x8xf32> -> vector<100x8xf32>
    %29 = vector.extract_strided_slice %28 {offsets = [0, 0], sizes = [96, 8], strides = [1, 1]} : vector<100x8xf32> to vector<96x8xf32>
    %30 = vector.extract_strided_slice %28 {offsets = [1, 0], sizes = [96, 8], strides = [1, 1]} : vector<100x8xf32> to vector<96x8xf32>
    %31 = vector.extract_strided_slice %28 {offsets = [2, 0], sizes = [96, 8], strides = [1, 1]} : vector<100x8xf32> to vector<96x8xf32>
    %32 = tpu.concatenate %29, %30, %31 in 1 : vector<96x8xf32>, vector<96x8xf32>, vector<96x8xf32> -> vector<96x24xf32>
    %cst_13 = arith.constant dense<0.000000e+00> : vector<96x8xf32>
    %33 = tpu.matmul %32, %25, %cst_13 {dimension_numbers = #tpu.dot_dimension_numbers<[1], [0], [0], [1], [0, 0, 1, 1], [], []>} : vector<96x24xf32>, vector<24x8xf32>, vector<96x8xf32> -> vector<96x8xf32>
    %34 = vector.broadcast %26 : vector<1x8xf32> to vector<96x8xf32>
    %35 = arith.addf %33, %34 : vector<96x8xf32>
    %cst_14 = arith.constant 0.000000e+00 : f32
    %36 = vector.broadcast %cst_14 : f32 to vector<96x8xf32>
    %37 = arith.maximumf %35, %36 : vector<96x8xf32>
    %c8_i32 = arith.constant 8 : i32
    %38 = vector.broadcast %c8_i32 : i32 to vector<96x1xi32>
    %39 = arith.cmpi sge, %1, %38 : vector<96x1xi32>
    %c20_i32_15 = arith.constant 20 : i32
    %40 = vector.broadcast %c20_i32_15 : i32 to vector<96x1xi32>
    %41 = arith.cmpi slt, %1, %40 : vector<96x1xi32>
    %42 = arith.andi %39, %41 : vector<96x1xi1>
    %cst_16 = arith.constant 0.000000e+00 : f32
    %43 = vector.shape_cast %42 : vector<96x1xi1> to vector<96x1xi1>
    %44 = vector.broadcast %43 : vector<96x1xi1> to vector<96x8xi1>
    %45 = vector.broadcast %cst_16 : f32 to vector<96x8xf32>
    %46 = arith.select %44, %37, %45 : vector<96x8xi1>, vector<96x8xf32>
    %c0_17 = arith.constant 0 : index
    %c0_18 = arith.constant 0 : index
    %47 = vector.load %arg6[%c0_17, %c0_18] : memref<24x8xf32, #tpu.memory_space<vmem>>, vector<24x8xf32>
    %c0_19 = arith.constant 0 : index
    %c0_20 = arith.constant 0 : index
    %48 = vector.load %arg7[%c0_19, %c0_20] : memref<1x8xf32, #tpu.memory_space<vmem>>, vector<1x8xf32>
    %cst_21 = arith.constant 0.000000e+00 : f32
    %49 = vector.broadcast %cst_21 : f32 to vector<4x8xf32>
    %50 = tpu.concatenate %46, %49 in 0 : vector<96x8xf32>, vector<4x8xf32> -> vector<100x8xf32>
    %51 = vector.extract_strided_slice %50 {offsets = [0, 0], sizes = [96, 8], strides = [1, 1]} : vector<100x8xf32> to vector<96x8xf32>
    %52 = vector.extract_strided_slice %50 {offsets = [2, 0], sizes = [96, 8], strides = [1, 1]} : vector<100x8xf32> to vector<96x8xf32>
    %53 = vector.extract_strided_slice %50 {offsets = [4, 0], sizes = [96, 8], strides = [1, 1]} : vector<100x8xf32> to vector<96x8xf32>
    %54 = tpu.concatenate %51, %52, %53 in 1 : vector<96x8xf32>, vector<96x8xf32>, vector<96x8xf32> -> vector<96x24xf32>
    %cst_22 = arith.constant dense<0.000000e+00> : vector<96x8xf32>
    %55 = tpu.matmul %54, %47, %cst_22 {dimension_numbers = #tpu.dot_dimension_numbers<[1], [0], [0], [1], [0, 0, 1, 1], [], []>} : vector<96x24xf32>, vector<24x8xf32>, vector<96x8xf32> -> vector<96x8xf32>
    %56 = vector.broadcast %48 : vector<1x8xf32> to vector<96x8xf32>
    %57 = arith.addf %55, %56 : vector<96x8xf32>
    %cst_23 = arith.constant 0.000000e+00 : f32
    %58 = vector.broadcast %cst_23 : f32 to vector<96x8xf32>
    %59 = arith.maximumf %57, %58 : vector<96x8xf32>
    %c4_i32 = arith.constant 4 : i32
    %60 = vector.broadcast %c4_i32 : i32 to vector<96x1xi32>
    %61 = arith.cmpi sge, %1, %60 : vector<96x1xi32>
    %c20_i32_24 = arith.constant 20 : i32
    %62 = vector.broadcast %c20_i32_24 : i32 to vector<96x1xi32>
    %63 = arith.cmpi slt, %1, %62 : vector<96x1xi32>
    %64 = arith.andi %61, %63 : vector<96x1xi1>
    %cst_25 = arith.constant 0.000000e+00 : f32
    %65 = vector.shape_cast %64 : vector<96x1xi1> to vector<96x1xi1>
    %66 = vector.broadcast %65 : vector<96x1xi1> to vector<96x8xi1>
    %67 = vector.broadcast %cst_25 : f32 to vector<96x8xf32>
    %68 = arith.select %66, %59, %67 : vector<96x8xi1>, vector<96x8xf32>
    %c0_26 = arith.constant 0 : index
    %c0_27 = arith.constant 0 : index
    %69 = vector.load %arg8[%c0_26, %c0_27] : memref<24x8xf32, #tpu.memory_space<vmem>>, vector<24x8xf32>
    %c0_28 = arith.constant 0 : index
    %c0_29 = arith.constant 0 : index
    %70 = vector.load %arg9[%c0_28, %c0_29] : memref<1x8xf32, #tpu.memory_space<vmem>>, vector<1x8xf32>
    %cst_30 = arith.constant 0.000000e+00 : f32
    %71 = vector.broadcast %cst_30 : f32 to vector<4x8xf32>
    %72 = tpu.concatenate %68, %71 in 0 : vector<96x8xf32>, vector<4x8xf32> -> vector<100x8xf32>
    %73 = vector.extract_strided_slice %72 {offsets = [0, 0], sizes = [96, 8], strides = [1, 1]} : vector<100x8xf32> to vector<96x8xf32>
    %74 = vector.extract_strided_slice %72 {offsets = [2, 0], sizes = [96, 8], strides = [1, 1]} : vector<100x8xf32> to vector<96x8xf32>
    %75 = vector.extract_strided_slice %72 {offsets = [4, 0], sizes = [96, 8], strides = [1, 1]} : vector<100x8xf32> to vector<96x8xf32>
    %76 = tpu.concatenate %73, %74, %75 in 1 : vector<96x8xf32>, vector<96x8xf32>, vector<96x8xf32> -> vector<96x24xf32>
    %cst_31 = arith.constant dense<0.000000e+00> : vector<96x8xf32>
    %77 = tpu.matmul %76, %69, %cst_31 {dimension_numbers = #tpu.dot_dimension_numbers<[1], [0], [0], [1], [0, 0, 1, 1], [], []>} : vector<96x24xf32>, vector<24x8xf32>, vector<96x8xf32> -> vector<96x8xf32>
    %78 = vector.broadcast %70 : vector<1x8xf32> to vector<96x8xf32>
    %79 = arith.addf %77, %78 : vector<96x8xf32>
    %cst_32 = arith.constant 0.000000e+00 : f32
    %80 = vector.broadcast %cst_32 : f32 to vector<96x8xf32>
    %81 = arith.maximumf %79, %80 : vector<96x8xf32>
    %c0_i32 = arith.constant 0 : i32
    %82 = vector.broadcast %c0_i32 : i32 to vector<96x1xi32>
    %83 = arith.cmpi sge, %1, %82 : vector<96x1xi32>
    %c20_i32_33 = arith.constant 20 : i32
    %84 = vector.broadcast %c20_i32_33 : i32 to vector<96x1xi32>
    %85 = arith.cmpi slt, %1, %84 : vector<96x1xi32>
    %86 = arith.andi %83, %85 : vector<96x1xi1>
    %cst_34 = arith.constant 0.000000e+00 : f32
    %87 = vector.shape_cast %86 : vector<96x1xi1> to vector<96x1xi1>
    %88 = vector.broadcast %87 : vector<96x1xi1> to vector<96x8xi1>
    %89 = vector.broadcast %cst_34 : f32 to vector<96x8xf32>
    %90 = arith.select %88, %81, %89 : vector<96x8xi1>, vector<96x8xf32>
    %91 = vector.shape_cast %90 : vector<96x8xf32> to vector<4x24x8xf32>
    %c0_35 = arith.constant 0 : index
    %c0_36 = arith.constant 0 : index
    %92 = vector.load %arg10[%c0_35, %c0_36] : memref<3x24xf32, #tpu.memory_space<vmem>>, vector<3x24xf32>
    %93 = vector.shape_cast %92 : vector<3x24xf32> to vector<1x3x24xf32>
    %94 = vector.shape_cast %93 : vector<1x3x24xf32> to vector<1x3x24xf32>
    %95 = vector.broadcast %94 : vector<1x3x24xf32> to vector<4x3x24xf32>
    %cst_37 = arith.constant dense<0.000000e+00> : vector<4x3x8xf32>
    %96 = tpu.matmul %95, %91, %cst_37 {dimension_numbers = #tpu.dot_dimension_numbers<[2], [1], [1], [2], [0, 0, 0, 1, 1, 2], [0], [0]>} : vector<4x3x24xf32>, vector<4x24x8xf32>, vector<4x3x8xf32> -> vector<4x3x8xf32>
    %c0_38 = arith.constant 0 : index
    %c0_39 = arith.constant 0 : index
    %97 = vector.load %arg11[%c0_38, %c0_39] : memref<3x1xf32, #tpu.memory_space<vmem>>, vector<3x1xf32>
    %98 = vector.shape_cast %97 : vector<3x1xf32> to vector<1x3x1xf32>
    %99 = vector.broadcast %98 : vector<1x3x1xf32> to vector<4x3x8xf32>
    %100 = arith.addf %96, %99 : vector<4x3x8xf32>
    %c0_40 = arith.constant 0 : index
    %c0_41 = arith.constant 0 : index
    %c0_42 = arith.constant 0 : index
    %101 = vector.load %arg12[%c0_40, %c0_41, %c0_42] : memref<4x3x8xf32, #tpu.memory_space<vmem>>, vector<4x3x8xf32>
    tpu.vector_store %arg12[%c0_40, %c0_41, %c0_42], %100 {strides = array<i32>} : memref<4x3x8xf32, #tpu.memory_space<vmem>>, vector<4x3x8xf32>,
    return
  }
  func.func @transform_0(%arg0: i32) -> (i32, i32) {
    %c0_i32 = arith.constant 0 : i32
    %c0_i32_0 = arith.constant 0 : i32
    return %arg0, %c0_i32 : i32, i32
  }
  func.func @transform_1(%arg0: i32) -> (i32, i32) {
    %c0_i32 = arith.constant 0 : i32
    %c0_i32_0 = arith.constant 0 : i32
    %c0_i32_1 = arith.constant 0 : i32
    return %c0_i32, %c0_i32_0 : i32, i32
  }
  func.func @transform_2(%arg0: i32) -> (i32, i32) {
    %c0_i32 = arith.constant 0 : i32
    %c0_i32_0 = arith.constant 0 : i32
    %c0_i32_1 = arith.constant 0 : i32
    return %c0_i32, %c0_i32_0 : i32, i32
  }
  func.func @transform_3(%arg0: i32) -> (i32, i32) {
    %c0_i32 = arith.constant 0 : i32
    %c0_i32_0 = arith.constant 0 : i32
    %c0_i32_1 = arith.constant 0 : i32
    return %c0_i32, %c0_i32_0 : i32, i32
  }
  func.func @transform_4(%arg0: i32) -> (i32, i32) {
    %c0_i32 = arith.constant 0 : i32
    %c0_i32_0 = arith.constant 0 : i32
    %c0_i32_1 = arith.constant 0 : i32
    return %c0_i32, %c0_i32_0 : i32, i32
  }
  func.func @transform_5(%arg0: i32) -> (i32, i32) {
    %c0_i32 = arith.constant 0 : i32
    %c0_i32_0 = arith.constant 0 : i32
    %c0_i32_1 = arith.constant 0 : i32
    return %c0_i32, %c0_i32_0 : i32, i32
  }
  func.func @transform_6(%arg0: i32) -> (i32, i32) {
    %c0_i32 = arith.constant 0 : i32
    %c0_i32_0 = arith.constant 0 : i32
    %c0_i32_1 = arith.constant 0 : i32
    return %c0_i32, %c0_i32_0 : i32, i32
  }
  func.func @transform_7(%arg0: i32) -> (i32, i32) {
    %c0_i32 = arith.constant 0 : i32
    %c0_i32_0 = arith.constant 0 : i32
    %c0_i32_1 = arith.constant 0 : i32
    return %c0_i32, %c0_i32_0 : i32, i32
  }
  func.func @transform_8(%arg0: i32) -> (i32, i32) {
    %c0_i32 = arith.constant 0 : i32
    %c0_i32_0 = arith.constant 0 : i32
    %c0_i32_1 = arith.constant 0 : i32
    return %c0_i32, %c0_i32_0 : i32, i32
  }
  func.func @transform_9(%arg0: i32) -> (i32, i32) {
    %c0_i32 = arith.constant 0 : i32
    %c0_i32_0 = arith.constant 0 : i32
    %c0_i32_1 = arith.constant 0 : i32
    return %c0_i32, %c0_i32_0 : i32, i32
  }
  func.func @transform_10(%arg0: i32) -> (i32, i32) {
    %c0_i32 = arith.constant 0 : i32
    %c0_i32_0 = arith.constant 0 : i32
    %c0_i32_1 = arith.constant 0 : i32
    return %c0_i32, %c0_i32_0 : i32, i32
  }
  func.func @transform_11(%arg0: i32) -> (i32, i32, i32) {
    %c0_i32 = arith.constant 0 : i32
    %c0_i32_0 = arith.constant 0 : i32
    %c0_i32_1 = arith.constant 0 : i32
    return %arg0, %c0_i32, %c0_i32_0 : i32, i32, i32
  }
}

</mosaic_0001>

<llo_original>
// kernel: tpu_custom_call.1
$region0: #{tpu_custom_call.1}
  #allocation0 [shape = 'u32[]', space=smem, size = 0x4, offset = 0x4, fixed_abs, tag = 'smem constant byte address 0x4 - core index']
  #allocation1 [shape = 'u32[72,128]{1,0:T(1,128)}', space=vmem, size = 0x9000, scoped, tag = 'internal scratch']
  %s0 = inlined_call_operand.vmem [shape: f32[192,2], index: 0, kind: input, shape index: {}]
  %s1 = inlined_call_operand.vmem [shape: f32[6,8], index: 1, kind: input, shape index: {}]
  %s2 = inlined_call_operand.vmem [shape: f32[1,8], index: 2, kind: input, shape index: {}]
  %s3 = inlined_call_operand.vmem [shape: f32[24,8], index: 3, kind: input, shape index: {}]
  %s4 = inlined_call_operand.vmem [shape: f32[1,8], index: 4, kind: input, shape index: {}]
  %s5 = inlined_call_operand.vmem [shape: f32[24,8], index: 5, kind: input, shape index: {}]
  %s6 = inlined_call_operand.vmem [shape: f32[1,8], index: 6, kind: input, shape index: {}]
  %s7 = inlined_call_operand.vmem [shape: f32[24,8], index: 7, kind: input, shape index: {}]
  %s8 = inlined_call_operand.vmem [shape: f32[1,8], index: 8, kind: input, shape index: {}]
  %s9 = inlined_call_operand.vmem [shape: f32[3,24], index: 9, kind: input, shape index: {}]
  %s10 = inlined_call_operand.vmem [shape: f32[3,1], index: 10, kind: input, shape index: {}]
  %s11 = inlined_call_operand.vmem [shape: f32[8,3,8], index: 11, kind: output, shape index: {}]
  %s12 = sld [smem:[#allocation0]]
  $region77: #{tpu_custom_call.1} parent=0
    _
  %s14 = ssub.s32 1, %s12
  %s15 = scalar_select 0, %s14, %s12
  loop: start=0, step=1, limit=4
  $region2: #{tpu_custom_call.1} parent=0 // loop_pre_header
    _
  $region3: #{tpu_custom_call.1} parent=0 // loop_header
    %s17 = sphi 0, %s21
    %p18 = scmp.ge.s32.totalorder %s17, 4
    %s27 = sphi 0, %s29
    %s30 = sphi 0, %s27
    %s31 = sphi 0, %s30
    %s47 = sphi 0, %s31
    %s51 = sphi 0, %s51
    %s53 = sphi 0, %s51
    %s54 = sphi 0, %s53
    %s68 = sphi 0, %s54
    %s72 = sphi 0, %s72
    %s74 = sphi 0, %s72
    %s75 = sphi 0, %s74
    %s89 = sphi 0, %s75
    %s93 = sphi 0, %s93
    %s95 = sphi 0, %s93
    %s96 = sphi 0, %s95
    %s110 = sphi 0, %s96
    %s114 = sphi 0, %s114
    %s116 = sphi 0, %s114
    %s117 = sphi 0, %s116
    %s131 = sphi 0, %s117
    %s135 = sphi 0, %s135
    %s137 = sphi 0, %s135
    %s138 = sphi 0, %s137
    %s152 = sphi 0, %s138
    %s156 = sphi 0, %s156
    %s158 = sphi 0, %s156
    %s159 = sphi 0, %s158
    %s173 = sphi 0, %s159
    %s177 = sphi 0, %s177
    %s179 = sphi 0, %s177
    %s180 = sphi 0, %s179
    %s194 = sphi 0, %s180
    %s198 = sphi 0, %s198
    %s200 = sphi 0, %s198
    %s201 = sphi 0, %s200
    %s215 = sphi 0, %s201
    %s219 = sphi 0, %s219
    %s221 = sphi 0, %s219
    %s222 = sphi 0, %s221
    %s236 = sphi 0, %s222
    %s240 = sphi 0, %s240
    %s242 = sphi 0, %s240
    %s243 = sphi 0, %s242
    %s257 = sphi 0, %s243
    %s263 = sphi 0, %s265
    %s266 = sphi 0, %s263
    %s267 = sphi 0, %s266
    %s283 = sphi 0, %s267
  $region4: #{tpu_custom_call.1} parent=0 // loop_header_branch
    %20 = sbr.rel (%p18) target = $region8
  $region5: #{tpu_custom_call.1} parent=0 // loop_body
    %s22 = ssub.s32 %s17, 1
    %s23 = ssub.s32 %s17, 2
    %s24 = sadd.s32 %s17, 1
    %s25 = ssub.s32 %s17, %s24
    %p26 = scmp.eq.s32.totalorder %s25, 0
    %s28 = sadd.s32 %s27, 1
    %s29 = scalar_select %p26, %s27, %s28
    %p32 = pneg %p26
    %p33 = scmp.eq.s32.totalorder %s17, 1
    %p34 = por %p32, %p33
    %p35 = scmp.ne.s32.totalorder %s27, %s30
    %p36 = scmp.eq.s32.totalorder %s17, 0
    %p37 = por %p35, %p36
    %p38 = scmp.ne.s32.totalorder %s27, %s30
    %p39 = scmp.eq.s32.totalorder %s22, 1
    %p40 = por %p38, %p39
    %p41 = scmp.ne.s32.totalorder %s30, %s31
    %p42 = scmp.eq.s32.totalorder %s22, 0
    %p43 = por %p41, %p42
    %p44 = scmp.ne.s32.totalorder %s30, %s31
    %p45 = scmp.eq.s32.totalorder %s23, 1
    %p46 = por %p44, %p45
    %p48 = scmp.ne.s32.totalorder %s31, %s47
    %p49 = scmp.eq.s32.totalorder %s23, 0
    %p50 = por %p48, %p49
    %s52 = sadd.s32 %s51, 1
    %p55 = scmp.eq.s32.totalorder %s17, 1
    %p56 = scmp.ne.s32.totalorder %s51, %s53
    %p57 = scmp.eq.s32.totalorder %s17, 0
    %p58 = por %p56, %p57
    %p59 = scmp.ne.s32.totalorder %s51, %s53
    %p60 = scmp.eq.s32.totalorder %s22, 1
    %p61 = por %p59, %p60
    %p62 = scmp.ne.s32.totalorder %s53, %s54
    %p63 = scmp.eq.s32.totalorder %s22, 0
    %p64 = por %p62, %p63
    %p65 = scmp.ne.s32.totalorder %s53, %s54
    %p66 = scmp.eq.s32.totalorder %s23, 1
    %p67 = por %p65, %p66
    %p69 = scmp.ne.s32.totalorder %s54, %s68
    %p70 = scmp.eq.s32.totalorder %s23, 0
    %p71 = por %p69, %p70
    %s73 = sadd.s32 %s72, 1
    %p76 = scmp.eq.s32.totalorder %s17, 1
    %p77 = scmp.ne.s32.totalorder %s72, %s74
    %p78 = scmp.eq.s32.totalorder %s17, 0
    %p79 = por %p77, %p78
    %p80 = scmp.ne.s32.totalorder %s72, %s74
    %p81 = scmp.eq.s32.totalorder %s22, 1
    %p82 = por %p80, %p81
    %p83 = scmp.ne.s32.totalorder %s74, %s75
    %p84 = scmp.eq.s32.totalorder %s22, 0
    %p85 = por %p83, %p84
    %p86 = scmp.ne.s32.totalorder %s74, %s75
    %p87 = scmp.eq.s32.totalorder %s23, 1
    %p88 = por %p86, %p87
    %p90 = scmp.ne.s32.totalorder %s75, %s89
    %p91 = scmp.eq.s32.totalorder %s23, 0
    %p92 = por %p90, %p91
    %s94 = sadd.s32 %s93, 1
    %p97 = scmp.eq.s32.totalorder %s17, 1
    %p98 = scmp.ne.s32.totalorder %s93, %s95
    %p99 = scmp.eq.s32.totalorder %s17, 0
    %p100 = por %p98, %p99
    %p101 = scmp.ne.s32.totalorder %s93, %s95
    %p102 = scmp.eq.s32.totalorder %s22, 1
    %p103 = por %p101, %p102
    %p104 = scmp.ne.s32.totalorder %s95, %s96
    %p105 = scmp.eq.s32.totalorder %s22, 0
    %p106 = por %p104, %p105
    %p107 = scmp.ne.s32.totalorder %s95, %s96
    %p108 = scmp.eq.s32.totalorder %s23, 1
    %p109 = por %p107, %p108
    %p111 = scmp.ne.s32.totalorder %s96, %s110
    %p112 = scmp.eq.s32.totalorder %s23, 0
    %p113 = por %p111, %p112
    %s115 = sadd.s32 %s114, 1
    %p118 = scmp.eq.s32.totalorder %s17, 1
    %p119 = scmp.ne.s32.totalorder %s114, %s116
    %p120 = scmp.eq.s32.totalorder %s17, 0
    %p121 = por %p119, %p120
    %p122 = scmp.ne.s32.totalorder %s114, %s116
    %p123 = scmp.eq.s32.totalorder %s22, 1
    %p124 = por %p122, %p123
    %p125 = scmp.ne.s32.totalorder %s116, %s117
    %p126 = scmp.eq.s32.totalorder %s22, 0
    %p127 = por %p125, %p126
    %p128 = scmp.ne.s32.totalorder %s116, %s117
    %p129 = scmp.eq.s32.totalorder %s23, 1
    %p130 = por %p128, %p129
    %p132 = scmp.ne.s32.totalorder %s117, %s131
    %p133 = scmp.eq.s32.totalorder %s23, 0
    %p134 = por %p132, %p133
    %s136 = sadd.s32 %s135, 1
    %p139 = scmp.eq.s32.totalorder %s17, 1
    %p140 = scmp.ne.s32.totalorder %s135, %s137
    %p141 = scmp.eq.s32.totalorder %s17, 0
    %p142 = por %p140, %p141
    %p143 = scmp.ne.s32.totalorder %s135, %s137
    %p144 = scmp.eq.s32.totalorder %s22, 1
    %p145 = por %p143, %p144
    %p146 = scmp.ne.s32.totalorder %s137, %s138
    %p147 = scmp.eq.s32.totalorder %s22, 0
    %p148 = por %p146, %p147
    %p149 = scmp.ne.s32.totalorder %s137, %s138
    %p150 = scmp.eq.s32.totalorder %s23, 1
    %p151 = por %p149, %p150
    %p153 = scmp.ne.s32.totalorder %s138, %s152
    %p154 = scmp.eq.s32.totalorder %s23, 0
    %p155 = por %p153, %p154
    %s157 = sadd.s32 %s156, 1
    %p160 = scmp.eq.s32.totalorder %s17, 1
    %p161 = scmp.ne.s32.totalorder %s156, %s158
    %p162 = scmp.eq.s32.totalorder %s17, 0
    %p163 = por %p161, %p162
    %p164 = scmp.ne.s32.totalorder %s156, %s158
    %p165 = scmp.eq.s32.totalorder %s22, 1
    %p166 = por %p164, %p165
    %p167 = scmp.ne.s32.totalorder %s158, %s159
    %p168 = scmp.eq.s32.totalorder %s22, 0
    %p169 = por %p167, %p168
    %p170 = scmp.ne.s32.totalorder %s158, %s159
    %p171 = scmp.eq.s32.totalorder %s23, 1
    %p172 = por %p170, %p171
    %p174 = scmp.ne.s32.totalorder %s159, %s173
    %p175 = scmp.eq.s32.totalorder %s23, 0
    %p176 = por %p174, %p175
    %s178 = sadd.s32 %s177, 1
    %p181 = scmp.eq.s32.totalorder %s17, 1
    %p182 = scmp.ne.s32.totalorder %s177, %s179
    %p183 = scmp.eq.s32.totalorder %s17, 0
    %p184 = por %p182, %p183
    %p185 = scmp.ne.s32.totalorder %s177, %s179
    %p186 = scmp.eq.s32.totalorder %s22, 1
    %p187 = por %p185, %p186
    %p188 = scmp.ne.s32.totalorder %s179, %s180
    %p189 = scmp.eq.s32.totalorder %s22, 0
    %p190 = por %p188, %p189
    %p191 = scmp.ne.s32.totalorder %s179, %s180
    %p192 = scmp.eq.s32.totalorder %s23, 1
    %p193 = por %p191, %p192
    %p195 = scmp.ne.s32.totalorder %s180, %s194
    %p196 = scmp.eq.s32.totalorder %s23, 0
    %p197 = por %p195, %p196
    %s199 = sadd.s32 %s198, 1
    %p202 = scmp.eq.s32.totalorder %s17, 1
    %p203 = scmp.ne.s32.totalorder %s198, %s200
    %p204 = scmp.eq.s32.totalorder %s17, 0
    %p205 = por %p203, %p204
    %p206 = scmp.ne.s32.totalorder %s198, %s200
    %p207 = scmp.eq.s32.totalorder %s22, 1
    %p208 = por %p206, %p207
    %p209 = scmp.ne.s32.totalorder %s200, %s201
    %p210 = scmp.eq.s32.totalorder %s22, 0
    %p211 = por %p209, %p210
    %p212 = scmp.ne.s32.totalorder %s200, %s201
    %p213 = scmp.eq.s32.totalorder %s23, 1
    %p214 = por %p212, %p213
    %p216 = scmp.ne.s32.totalorder %s201, %s215
    %p217 = scmp.eq.s32.totalorder %s23, 0
    %p218 = por %p216, %p217
    %s220 = sadd.s32 %s219, 1
    %p223 = scmp.eq.s32.totalorder %s17, 1
    %p224 = scmp.ne.s32.totalorder %s219, %s221
    %p225 = scmp.eq.s32.totalorder %s17, 0
    %p226 = por %p224, %p225
    %p227 = scmp.ne.s32.totalorder %s219, %s221
    %p228 = scmp.eq.s32.totalorder %s22, 1
    %p229 = por %p227, %p228
    %p230 = scmp.ne.s32.totalorder %s221, %s222
    %p231 = scmp.eq.s32.totalorder %s22, 0
    %p232 = por %p230, %p231
    %p233 = scmp.ne.s32.totalorder %s221, %s222
    %p234 = scmp.eq.s32.totalorder %s23, 1
    %p235 = por %p233, %p234
    %p237 = scmp.ne.s32.totalorder %s222, %s236
    %p238 = scmp.eq.s32.totalorder %s23, 0
    %p239 = por %p237, %p238
    %s241 = sadd.s32 %s240, 1
    %p244 = scmp.eq.s32.totalorder %s17, 1
    %p245 = scmp.ne.s32.totalorder %s240, %s242
    %p246 = scmp.eq.s32.totalorder %s17, 0
    %p247 = por %p245, %p246
    %p248 = scmp.ne.s32.totalorder %s240, %s242
    %p249 = scmp.eq.s32.totalorder %s22, 1
    %p250 = por %p248, %p249
    %p251 = scmp.ne.s32.totalorder %s242, %s243
    %p252 = scmp.eq.s32.totalorder %s22, 0
    %p253 = por %p251, %p252
    %p254 = scmp.ne.s32.totalorder %s242, %s243
    %p255 = scmp.eq.s32.totalorder %s23, 1
    %p256 = por %p254, %p255
    %p258 = scmp.ne.s32.totalorder %s243, %s257
    %p259 = scmp.eq.s32.totalorder %s23, 0
    %p260 = por %p258, %p259
    %s261 = ssub.s32 %s17, %s24
    %p262 = scmp.eq.s32.totalorder %s261, 0
    %s264 = sadd.s32 %s263, 1
    %s265 = scalar_select %p262, %s263, %s264
    %p268 = pneg %p262
    %p269 = scmp.eq.s32.totalorder %s17, 1
    %p270 = por %p268, %p269
    %p271 = scmp.ne.s32.totalorder %s263, %s266
    %p272 = scmp.eq.s32.totalorder %s17, 0
    %p273 = por %p271, %p272
    %p274 = scmp.ne.s32.totalorder %s263, %s266
    %p275 = scmp.eq.s32.totalorder %s22, 1
    %p276 = por %p274, %p275
    %p277 = scmp.ne.s32.totalorder %s266, %s267
    %p278 = scmp.eq.s32.totalorder %s22, 0
    %p279 = por %p277, %p278
    %p280 = scmp.ne.s32.totalorder %s266, %s267
    %p281 = scmp.eq.s32.totalorder %s23, 1
    %p282 = por %p280, %p281
    %p284 = scmp.ne.s32.totalorder %s267, %s283
    %p285 = scmp.eq.s32.totalorder %s23, 0
    %p286 = por %p284, %p285
    %p287 = scmp.le.s32.totalorder 1, %s17
    %p288 = scmp.lt.s32.totalorder %s17, 3
    %p289 = pnand %p287, %p288
    %p290 = pneg %p289
    // Predicated region
    $region9: #{tpu_custom_call.1} parent=5 // pred_check
      _
    $region10: #{tpu_custom_call.1} parent=5 // pred_check_branch
      %292 = sbr.rel (%p289) target = $region12
    $region11: #{tpu_custom_call.1} parent=5 // pred_region
      %s293 = ssub.s32 %s17, 1
      // Predicated region
      $region13: #{tpu_custom_call.1} parent=11 // pred_check
        %p294 = pneg %p64
      $region14: #{tpu_custom_call.1} parent=11 // pred_check_branch
        %296 = sbr.rel (%p294) target = $region16
      $region15: #{tpu_custom_call.1} parent=11 // pred_region
        _
      $region16: #{tpu_custom_call.1} parent=11 // pred_fallthru
        _
      // Predicated region
      $region17: #{tpu_custom_call.1} parent=11 // pred_check
        %p297 = pneg %p85
      $region18: #{tpu_custom_call.1} parent=11 // pred_check_branch
        %299 = sbr.rel (%p297) target = $region20
      $region19: #{tpu_custom_call.1} parent=11 // pred_region
        _
      $region20: #{tpu_custom_call.1} parent=11 // pred_fallthru
        _
      // Predicated region
      $region21: #{tpu_custom_call.1} parent=11 // pred_check
        %p300 = pneg %p106
      $region22: #{tpu_custom_call.1} parent=11 // pred_check_branch
        %302 = sbr.rel (%p300) target = $region24
      $region23: #{tpu_custom_call.1} parent=11 // pred_region
        _
      $region24: #{tpu_custom_call.1} parent=11 // pred_fallthru
        _
      // Predicated region
      $region25: #{tpu_custom_call.1} parent=11 // pred_check
        %p303 = pneg %p127
      $region26: #{tpu_custom_call.1} parent=11 // pred_check_branch
        %305 = sbr.rel (%p303) target = $region28
      $region27: #{tpu_custom_call.1} parent=11 // pred_region
        _
      $region28: #{tpu_custom_call.1} parent=11 // pred_fallthru
        _
      // Predicated region
      $region29: #{tpu_custom_call.1} parent=11 // pred_check
        %p306 = pneg %p148
      $region30: #{tpu_custom_call.1} parent=11 // pred_check_branch
        %308 = sbr.rel (%p306) target = $region32
      $region31: #{tpu_custom_call.1} parent=11 // pred_region
        _
      $region32: #{tpu_custom_call.1} parent=11 // pred_fallthru
        _
      // Predicated region
      $region33: #{tpu_custom_call.1} parent=11 // pred_check
        %p309 = pneg %p169
      $region34: #{tpu_custom_call.1} parent=11 // pred_check_branch
        %311 = sbr.rel (%p309) target = $region36
      $region35: #{tpu_custom_call.1} parent=11 // pred_region
        _
      $region36: #{tpu_custom_call.1} parent=11 // pred_fallthru
        _
      // Predicated region
      $region37: #{tpu_custom_call.1} parent=11 // pred_check
        %p312 = pneg %p190
      $region38: #{tpu_custom_call.1} parent=11 // pred_check_branch
        %314 = sbr.rel (%p312) target = $region40
      $region39: #{tpu_custom_call.1} parent=11 // pred_region
        _
      $region40: #{tpu_custom_call.1} parent=11 // pred_fallthru
        _
      // Predicated region
      $region41: #{tpu_custom_call.1} parent=11 // pred_check
        %p315 = pneg %p211
      $region42: #{tpu_custom_call.1} parent=11 // pred_check_branch
        %317 = sbr.rel (%p315) target = $region44
      $region43: #{tpu_custom_call.1} parent=11 // pred_region
        _
      $region44: #{tpu_custom_call.1} parent=11 // pred_fallthru
        _
      // Predicated region
      $region45: #{tpu_custom_call.1} parent=11 // pred_check
        %p318 = pneg %p232
      $region46: #{tpu_custom_call.1} parent=11 // pred_check_branch
        %320 = sbr.rel (%p318) target = $region48
      $region47: #{tpu_custom_call.1} parent=11 // pred_region
        _
      $region48: #{tpu_custom_call.1} parent=11 // pred_fallthru
        _
      // Predicated region
      $region49: #{tpu_custom_call.1} parent=11 // pred_check
        %p321 = pneg %p253
      $region50: #{tpu_custom_call.1} parent=11 // pred_check_branch
        %323 = sbr.rel (%p321) target = $region52
      $region51: #{tpu_custom_call.1} parent=11 // pred_region
        _
      $region52: #{tpu_custom_call.1} parent=11 // pred_fallthru
        _
    $region12: #{tpu_custom_call.1} parent=5 // pred_fallthru
      _
    %p324 = scmp.lt.s32.totalorder %s17, 2
    // Predicated region
    $region53: #{tpu_custom_call.1} parent=5 // pred_check
      %p325 = pneg %p324
    $region54: #{tpu_custom_call.1} parent=5 // pred_check_branch
      %327 = sbr.rel (%p325) target = $region56
    $region55: #{tpu_custom_call.1} parent=5 // pred_region
      // Predicated region
      $region57: #{tpu_custom_call.1} parent=55 // pred_check
        %p328 = pneg %p37
      $region58: #{tpu_custom_call.1} parent=55 // pred_check_branch
        %330 = sbr.rel (%p328) target = $region60
      $region59: #{tpu_custom_call.1} parent=55 // pred_region
        %s331 = smul.u32 12, %s17
        %p332 = scmp.lt.s32.totalorder %s331, 23
        %s333 = scalar_select %p332, %s331, 23
        %s334 = smul.addr %s333, 8
        %s335 = scalar_lea.vmem %s0, %s334
        %s336 = smul.u32 12, %s17
      $region60: #{tpu_custom_call.1} parent=55 // pred_fallthru
        _
    $region56: #{tpu_custom_call.1} parent=5 // pred_fallthru
      _
    %p337 = scmp.le.s32.totalorder 1, %s17
    %p338 = scmp.lt.s32.totalorder %s17, 3
    %p339 = pnand %p337, %p338
    %p340 = pneg %p339
    // Predicated region
    $region61: #{tpu_custom_call.1} parent=5 // pred_check
      _
    $region62: #{tpu_custom_call.1} parent=5 // pred_check_branch
      %342 = sbr.rel (%p339) target = $region64
    $region63: #{tpu_custom_call.1} parent=5 // pred_region
      %s343 = ssub.s32 %s17, 1
      %s344 = smul.u32 12, %s22
      %p345 = scmp.lt.s32.totalorder %s344, 23
      %s346 = scalar_select %p345, %s344, 23
      %s347 = smul.addr %s346, 8
      %s348 = scalar_lea.vmem %s0, %s347
      %p349 = pneg %p43
      %p350 = pneg %p40
      %p351 = pneg %p64
      %p352 = pneg %p61
      %p353 = pneg %p85
      %p354 = pneg %p82
      %p355 = pneg %p106
      %p356 = pneg %p103
      %p357 = pneg %p127
      %p358 = pneg %p124
      %p359 = pneg %p148
      %p360 = pneg %p145
      %p361 = pneg %p169
      %p362 = pneg %p166
      %p363 = pneg %p190
      %p364 = pneg %p187
      %p365 = pneg %p211
      %p366 = pneg %p208
      %p367 = pneg %p232
      %p368 = pneg %p229
      %p369 = pneg %p253
      %p370 = pneg %p250
      %p371 = pneg %p279
      %p372 = pneg %p276
      %s373 = smul.u32 4, %s22
      %p374 = scmp.lt.s32.totalorder %s373, 7
      %s375 = scalar_select %p374, %s373, 7
      %s376 = smul.addr %s375, 4
      %s377 = scalar_lea.vmem %s11, %s376
      %s378 = smul.u32 12, %s22
      %p379 = scmp.lt.s32.totalorder %s378, 23
      %s380 = scalar_select %p379, %s378, 23
      %s381 = smul.addr %s380, 8
      %s382 = scalar_lea.vmem %s0, %s381
      %s383 = smul.u32 12, %s22
      %s384 = smul.u32 4, %s22
      %p385 = scmp.lt.s32.totalorder %s384, 7
      %s386 = scalar_select %p385, %s384, 7
      %s387 = smul.addr %s386, 4
      %s388 = scalar_lea.vmem %s11, %s387
      %s389 = smul.u32 4, %s22
      %v390 = vlaneseq
      %v391 = vshrl.u32 %v390, 7
      %v392 = vadd.s32 %v391, 8
      %v393 = vadd.s32 %v391, 16
      %v394 = vld [vmem:[%s382] sm:$0xff]
      %v395 = vld [vmem:[%s382 + $0x8] sm:$0xff]
      %v396 = vld [vmem:[%s382 + $0x10] sm:$0xff]
      %v397 = vld [vmem:[%s382 + $0x18] sm:$0xff]
      %v398 = vld [vmem:[%s382 + $0x20] sm:$0xff]
      %v399 = vld [vmem:[%s382 + $0x28] sm:$0xff]
      %v400 = vld [vmem:[%s382 + $0x30] sm:$0xff]
      %v401 = vld [vmem:[%s382 + $0x38] sm:$0xff]
      %v402 = vld [vmem:[%s382 + $0x40] sm:$0xff]
      %v403 = vld [vmem:[%s382 + $0x48] sm:$0xff]
      %v404 = vld [vmem:[%s382 + $0x50] sm:$0xff]
      %v405 = vld [vmem:[%s382 + $0x58] sm:$0xff]
      %v406 = vld [vmem:[%s1] sm:$0x3f]
      %v407 = vld [vmem:[%s2] sm:$0x1]
      %vm421 = vcmask 1046528
      %v422 = vrot.slane %v394, 1
      %v423 = vrot.slane %v395, 1
      %v424 = vsel %vm421, %v422, %v423
      %v425 = vrot.slane %v396, 1
      %v426 = vsel %vm421, %v423, %v425
      %v427 = vrot.slane %v397, 1
      %v428 = vsel %vm421, %v425, %v427
      %v429 = vrot.slane %v398, 1
      %v430 = vsel %vm421, %v427, %v429
      %v431 = vrot.slane %v399, 1
      %v432 = vsel %vm421, %v429, %v431
      %v433 = vrot.slane %v400, 1
      %v434 = vsel %vm421, %v431, %v433
      %v435 = vrot.slane %v401, 1
      %v436 = vsel %vm421, %v433, %v435
      %v437 = vrot.slane %v402, 1
      %v438 = vsel %vm421, %v435, %v437
      %v439 = vrot.slane %v403, 1
      %v440 = vsel %vm421, %v437, %v439
      %v441 = vrot.slane %v404, 1
      %v442 = vsel %vm421, %v439, %v441
      %v443 = vrot.slane %v405, 1
      %v444 = vsel %vm421, %v441, %v443
      %v445 = vrot.slane 0.0, 1
      %v446 = vsel %vm421, %v443, %v445
      %447 = vrot.lane.b32.xlu0 %v424, 2
      %v448 = vpop.permute.xlu0 %447
      %449 = vrot.lane.b32.xlu0 %v426, 2
      %v450 = vpop.permute.xlu0 %449
      %451 = vrot.lane.b32.xlu0 %v428, 2
      %v452 = vpop.permute.xlu0 %451
      %453 = vrot.lane.b32.xlu0 %v430, 2
      %v454 = vpop.permute.xlu0 %453
      %455 = vrot.lane.b32.xlu0 %v432, 2
      %v456 = vpop.permute.xlu0 %455
      %457 = vrot.lane.b32.xlu0 %v434, 2
      %v458 = vpop.permute.xlu0 %457
      %459 = vrot.lane.b32.xlu0 %v436, 2
      %v460 = vpop.permute.xlu0 %459
      %461 = vrot.lane.b32.xlu0 %v438, 2
      %v462 = vpop.permute.xlu0 %461
      %463 = vrot.lane.b32.xlu0 %v440, 2
      %v464 = vpop.permute.xlu0 %463
      %465 = vrot.lane.b32.xlu0 %v442, 2
      %v466 = vpop.permute.xlu0 %465
      %467 = vrot.lane.b32.xlu0 %v444, 2
      %v468 = vpop.permute.xlu0 %467
      %469 = vrot.lane.b32.xlu0 %v446, 2
      %v470 = vpop.permute.xlu0 %469
      %vm483 = vcmask 1045504
      %v484 = vrot.slane %v394, 2
      %v485 = vrot.slane %v395, 2
      %v486 = vsel %vm483, %v484, %v485
      %v487 = vrot.slane %v396, 2
      %v488 = vsel %vm483, %v485, %v487
      %v489 = vrot.slane %v397, 2
      %v490 = vsel %vm483, %v487, %v489
      %v491 = vrot.slane %v398, 2
      %v492 = vsel %vm483, %v489, %v491
      %v493 = vrot.slane %v399, 2
      %v494 = vsel %vm483, %v491, %v493
      %v495 = vrot.slane %v400, 2
      %v496 = vsel %vm483, %v493, %v495
      %v497 = vrot.slane %v401, 2
      %v498 = vsel %vm483, %v495, %v497
      %v499 = vrot.slane %v402, 2
      %v500 = vsel %vm483, %v497, %v499
      %v501 = vrot.slane %v403, 2
      %v502 = vsel %vm483, %v499, %v501
      %v503 = vrot.slane %v404, 2
      %v504 = vsel %vm483, %v501, %v503
      %v505 = vrot.slane %v405, 2
      %v506 = vsel %vm483, %v503, %v505
      %v507 = vrot.slane 0.0, 2
      %v508 = vsel %vm483, %v505, %v507
      %509 = vrot.lane.b32.xlu0 %v486, 4
      %v510 = vpop.permute.xlu0 %509
      %511 = vrot.lane.b32.xlu0 %v488, 4
      %v512 = vpop.permute.xlu0 %511
      %513 = vrot.lane.b32.xlu0 %v490, 4
      %v514 = vpop.permute.xlu0 %513
      %515 = vrot.lane.b32.xlu0 %v492, 4
      %v516 = vpop.permute.xlu0 %515
      %517 = vrot.lane.b32.xlu0 %v494, 4
      %v518 = vpop.permute.xlu0 %517
      %519 = vrot.lane.b32.xlu0 %v496, 4
      %v520 = vpop.permute.xlu0 %519
      %521 = vrot.lane.b32.xlu0 %v498, 4
      %v522 = vpop.permute.xlu0 %521
      %523 = vrot.lane.b32.xlu0 %v500, 4
      %v524 = vpop.permute.xlu0 %523
      %525 = vrot.lane.b32.xlu0 %v502, 4
      %v526 = vpop.permute.xlu0 %525
      %527 = vrot.lane.b32.xlu0 %v504, 4
      %v528 = vpop.permute.xlu0 %527
      %529 = vrot.lane.b32.xlu0 %v506, 4
      %v530 = vpop.permute.xlu0 %529
      %531 = vrot.lane.b32.xlu0 %v508, 4
      %v532 = vpop.permute.xlu0 %531
      %vm545 = vcmask 15360
      %v546 = vsel %vm545, %v394, %v448
      %v547 = vsel %vm545, %v395, %v450
      %v548 = vsel %vm545, %v396, %v452
      %v549 = vsel %vm545, %v397, %v454
      %v550 = vsel %vm545, %v398, %v456
      %v551 = vsel %vm545, %v399, %v458
      %v552 = vsel %vm545, %v400, %v460
      %v553 = vsel %vm545, %v401, %v462
      %v554 = vsel %vm545, %v402, %v464
      %v555 = vsel %vm545, %v403, %v466
      %v556 = vsel %vm545, %v404, %v468
      %v557 = vsel %vm545, %v405, %v470
      %vm558 = vcmask 31744
      %v559 = vsel %vm558, %v546, %v510
      %v560 = vsel %vm558, %v547, %v512
      %v561 = vsel %vm558, %v548, %v514
      %v562 = vsel %vm558, %v549, %v516
      %v563 = vsel %vm558, %v550, %v518
      %v564 = vsel %vm558, %v551, %v520
      %v565 = vsel %vm558, %v552, %v522
      %v566 = vsel %vm558, %v553, %v524
      %v567 = vsel %vm558, %v554, %v526
      %v568 = vsel %vm558, %v555, %v528
      %v569 = vsel %vm558, %v556, %v530
      %v570 = vsel %vm558, %v557, %v532
      %v572 = vperm.slane %v407, 0
      %vm574 = vcmask 48128
      %v576 = vsel %vm574, %v559, 0
      %v579 = vsel %vm574, %v560, 0
      %v582 = vsel %vm574, %v561, 0
      %v585 = vsel %vm574, %v562, 0
      %v588 = vsel %vm574, %v563, 0
      %v591 = vsel %vm574, %v564, 0
      %v594 = vsel %vm574, %v565, 0
      %v597 = vsel %vm574, %v566, 0
      %v600 = vsel %vm574, %v567, 0
      %v603 = vsel %vm574, %v568, 0
      %v606 = vsel %vm574, %v569, 0
      %v609 = vsel %vm574, %v570, 0
      %v612 = vsel %vm483, %v406, 0
      %614 = vmatpush.msra.mxu0 0.0
      %615 = vmatpush.msra.mxu0 0.0
      %616 = vmatpush.msra.mxu0 0.0
      %617 = vmatpush.msra.mxu0 0.0
      %618 = vmatpush.msra.mxu0 0.0
      %619 = vmatpush.msra.mxu0 0.0
      %620 = vmatpush.msra.mxu0 0.0
      %621 = vmatpush.msra.mxu0 0.0
      %622 = vmatpush.msra.mxu0 0.0
      %623 = vmatpush.msra.mxu0 0.0
      %624 = vmatpush.msra.mxu0 0.0
      %625 = vmatpush.msra.mxu0 0.0
      %626 = vmatpush.msra.mxu0 0.0
      %627 = vmatpush.msra.mxu0 0.0
      %628 = vmatpush.msra.mxu0 0.0
      %629 = vmatpush.msra.mxu0 %v612
      %630 = vmatmul.f32.gmra.mxu0 %v576
      %v631 = vpop.f32.mrf.mxu0
      %v632 = vadd.f32 %v572, %v631
      %633 = vmatmul.f32.gmra.mxu0 %v579
      %v634 = vpop.f32.mrf.mxu0
      %v635 = vadd.f32 %v572, %v634
      %636 = vmatmul.f32.gmra.mxu0 %v582
      %v637 = vpop.f32.mrf.mxu0
      %v638 = vadd.f32 %v572, %v637
      %639 = vmatmul.f32.gmra.mxu0 %v585
      %v640 = vpop.f32.mrf.mxu0
      %v641 = vadd.f32 %v572, %v640
      %642 = vmatmul.f32.gmra.mxu0 %v588
      %v643 = vpop.f32.mrf.mxu0
      %v644 = vadd.f32 %v572, %v643
      %645 = vmatmul.f32.gmra.mxu0 %v591
      %v646 = vpop.f32.mrf.mxu0
      %v647 = vadd.f32 %v572, %v646
      %648 = vmatmul.f32.gmra.mxu0 %v594
      %v649 = vpop.f32.mrf.mxu0
      %v650 = vadd.f32 %v572, %v649
      %651 = vmatmul.f32.gmra.mxu0 %v597
      %v652 = vpop.f32.mrf.mxu0
      %v653 = vadd.f32 %v572, %v652
      %654 = vmatmul.f32.gmra.mxu0 %v600
      %v655 = vpop.f32.mrf.mxu0
      %v656 = vadd.f32 %v572, %v655
      %657 = vmatmul.f32.gmra.mxu0 %v603
      %v658 = vpop.f32.mrf.mxu0
      %v659 = vadd.f32 %v572, %v658
      %660 = vmatmul.f32.gmra.mxu0 %v606
      %v661 = vpop.f32.mrf.mxu0
      %v662 = vadd.f32 %v572, %v661
      %663 = vmatmul.f32.gmra.mxu0 %v609
      %v664 = vpop.f32.mrf.mxu0
      %v665 = vadd.f32 %v572, %v664
      %666 = vdwg.mxu0
      %v667 = vmax.f32 %v632, 0.0
      %v668 = vmax.f32 %v635, 0.0
      %v669 = vmax.f32 %v638, 0.0
      %v670 = vmax.f32 %v641, 0.0
      %v671 = vmax.f32 %v644, 0.0
      %v672 = vmax.f32 %v647, 0.0
      %v673 = vmax.f32 %v650, 0.0
      %v674 = vmax.f32 %v653, 0.0
      %v675 = vmax.f32 %v656, 0.0
      %v676 = vmax.f32 %v659, 0.0
      %v677 = vmax.f32 %v662, 0.0
      %v678 = vmax.f32 %v665, 0.0
      %vm679 = vcmp.ge.s32.totalorder %v391, 10
      %vm680 = vcmp.ge.s32.totalorder %v392, 10
      %vm681 = vcmp.ge.s32.totalorder %v393, 10
      %vm682 = vcmp.lt.s32.totalorder %v391, 20
      %vm683 = vcmp.lt.s32.totalorder %v392, 20
      %vm684 = vcmp.lt.s32.totalorder %v393, 20
      %vm685 = vmand %vm679, %vm682
      %vm686 = vmand %vm680, %vm683
      %vm687 = vmand %vm681, %vm684
      %v688 = vsel %vm685, 1, 0
      %v689 = vsel %vm686, 1, 0
      %v690 = vsel %vm687, 1, 0
      %vm691 = vcmp.eq.s32.totalorder %v688, 1
      %vm692 = vcmp.eq.s32.totalorder %v689, 1
      %vm693 = vcmp.eq.s32.totalorder %v690, 1
      %v694 = vsel %vm691, %v667, 0.0
      %v695 = vsel %vm692, %v668, 0.0
      %v696 = vsel %vm693, %v669, 0.0
      %v697 = vsel %vm691, %v670, 0.0
      %v698 = vsel %vm692, %v671, 0.0
      %v699 = vsel %vm693, %v672, 0.0
      %v700 = vsel %vm691, %v673, 0.0
      %v701 = vsel %vm692, %v674, 0.0
      %v702 = vsel %vm693, %v675, 0.0
      %v703 = vsel %vm691, %v676, 0.0
      %v704 = vsel %vm692, %v677, 0.0
      %v705 = vsel %vm693, %v678, 0.0
      %v706 = vld [vmem:[%s3] sm:$0xff]
      %v707 = vld [vmem:[%s3 + $0x8] sm:$0xff]
      %v708 = vld [vmem:[%s3 + $0x10] sm:$0xff]
      %v709 = vld [vmem:[%s4] sm:$0x1]
      %v722 = vrot.slane %v694, 1
      %v723 = vrot.slane %v695, 1
      %v724 = vsel %vm421, %v722, %v723
      %v725 = vrot.slane %v696, 1
      %v726 = vsel %vm421, %v723, %v725
      %v727 = vrot.slane %v697, 1
      %v728 = vsel %vm421, %v725, %v727
      %v729 = vrot.slane %v698, 1
      %v730 = vsel %vm421, %v727, %v729
      %v731 = vrot.slane %v699, 1
      %v732 = vsel %vm421, %v729, %v731
      %v733 = vrot.slane %v700, 1
      %v734 = vsel %vm421, %v731, %v733
      %v735 = vrot.slane %v701, 1
      %v736 = vsel %vm421, %v733, %v735
      %v737 = vrot.slane %v702, 1
      %v738 = vsel %vm421, %v735, %v737
      %v739 = vrot.slane %v703, 1
      %v740 = vsel %vm421, %v737, %v739
      %v741 = vrot.slane %v704, 1
      %v742 = vsel %vm421, %v739, %v741
      %v743 = vrot.slane %v705, 1
      %v744 = vsel %vm421, %v741, %v743
      %v745 = vsel %vm421, %v743, %v445
      %746 = vrot.lane.b32.xlu0 %v724, 8
      %v747 = vpop.permute.xlu0 %746
      %748 = vrot.lane.b32.xlu0 %v726, 8
      %v749 = vpop.permute.xlu0 %748
      %750 = vrot.lane.b32.xlu0 %v728, 8
      %v751 = vpop.permute.xlu0 %750
      %752 = vrot.lane.b32.xlu0 %v730, 8
      %v753 = vpop.permute.xlu0 %752
      %754 = vrot.lane.b32.xlu0 %v732, 8
      %v755 = vpop.permute.xlu0 %754
      %756 = vrot.lane.b32.xlu0 %v734, 8
      %v757 = vpop.permute.xlu0 %756
      %758 = vrot.lane.b32.xlu0 %v736, 8
      %v759 = vpop.permute.xlu0 %758
      %760 = vrot.lane.b32.xlu0 %v738, 8
      %v761 = vpop.permute.xlu0 %760
      %762 = vrot.lane.b32.xlu0 %v740, 8
      %v763 = vpop.permute.xlu0 %762
      %764 = vrot.lane.b32.xlu0 %v742, 8
      %v765 = vpop.permute.xlu0 %764
      %766 = vrot.lane.b32.xlu0 %v744, 8
      %v767 = vpop.permute.xlu0 %766
      %768 = vrot.lane.b32.xlu0 %v745, 8
      %v769 = vpop.permute.xlu0 %768
      %v782 = vrot.slane %v694, 2
      %v783 = vrot.slane %v695, 2
      %v784 = vsel %vm483, %v782, %v783
      %v785 = vrot.slane %v696, 2
      %v786 = vsel %vm483, %v783, %v785
      %v787 = vrot.slane %v697, 2
      %v788 = vsel %vm483, %v785, %v787
      %v789 = vrot.slane %v698, 2
      %v790 = vsel %vm483, %v787, %v789
      %v791 = vrot.slane %v699, 2
      %v792 = vsel %vm483, %v789, %v791
      %v793 = vrot.slane %v700, 2
      %v794 = vsel %vm483, %v791, %v793
      %v795 = vrot.slane %v701, 2
      %v796 = vsel %vm483, %v793, %v795
      %v797 = vrot.slane %v702, 2
      %v798 = vsel %vm483, %v795, %v797
      %v799 = vrot.slane %v703, 2
      %v800 = vsel %vm483, %v797, %v799
      %v801 = vrot.slane %v704, 2
      %v802 = vsel %vm483, %v799, %v801
      %v803 = vrot.slane %v705, 2
      %v804 = vsel %vm483, %v801, %v803
      %v805 = vsel %vm483, %v803, %v507
      %806 = vrot.lane.b32.xlu0 %v784, 16
      %v807 = vpop.permute.xlu0 %806
      %808 = vrot.lane.b32.xlu0 %v786, 16
      %v809 = vpop.permute.xlu0 %808
      %810 = vrot.lane.b32.xlu0 %v788, 16
      %v811 = vpop.permute.xlu0 %810
      %812 = vrot.lane.b32.xlu0 %v790, 16
      %v813 = vpop.permute.xlu0 %812
      %814 = vrot.lane.b32.xlu0 %v792, 16
      %v815 = vpop.permute.xlu0 %814
      %816 = vrot.lane.b32.xlu0 %v794, 16
      %v817 = vpop.permute.xlu0 %816
      %818 = vrot.lane.b32.xlu0 %v796, 16
      %v819 = vpop.permute.xlu0 %818
      %820 = vrot.lane.b32.xlu0 %v798, 16
      %v821 = vpop.permute.xlu0 %820
      %822 = vrot.lane.b32.xlu0 %v800, 16
      %v823 = vpop.permute.xlu0 %822
      %824 = vrot.lane.b32.xlu0 %v802, 16
      %v825 = vpop.permute.xlu0 %824
      %826 = vrot.lane.b32.xlu0 %v804, 16
      %v827 = vpop.permute.xlu0 %826
      %828 = vrot.lane.b32.xlu0 %v805, 16
      %v829 = vpop.permute.xlu0 %828
      %vm842 = vcmask 64512
      %v843 = vsel %vm842, %v694, %v747
      %v844 = vsel %vm842, %v695, %v749
      %v845 = vsel %vm842, %v696, %v751
      %v846 = vsel %vm842, %v697, %v753
      %v847 = vsel %vm842, %v698, %v755
      %v848 = vsel %vm842, %v699, %v757
      %v849 = vsel %vm842, %v700, %v759
      %v850 = vsel %vm842, %v701, %v761
      %v851 = vsel %vm842, %v702, %v763
      %v852 = vsel %vm842, %v703, %v765
      %v853 = vsel %vm842, %v704, %v767
      %v854 = vsel %vm842, %v705, %v769
      %vm855 = vcmask 130048
      %v856 = vsel %vm855, %v843, %v807
      %v857 = vsel %vm855, %v844, %v809
      %v858 = vsel %vm855, %v845, %v811
      %v859 = vsel %vm855, %v846, %v813
      %v860 = vsel %vm855, %v847, %v815
      %v861 = vsel %vm855, %v848, %v817
      %v862 = vsel %vm855, %v849, %v819
      %v863 = vsel %vm855, %v850, %v821
      %v864 = vsel %vm855, %v851, %v823
      %v865 = vsel %vm855, %v852, %v825
      %v866 = vsel %vm855, %v853, %v827
      %v867 = vsel %vm855, %v854, %v829
      %v869 = vperm.slane %v709, 0
      %vm871 = vcmask 195584
      %v873 = vsel %vm871, %v856, 0
      %v876 = vsel %vm871, %v857, 0
      %v879 = vsel %vm871, %v858, 0
      %v882 = vsel %vm871, %v859, 0
      %v885 = vsel %vm871, %v860, 0
      %v888 = vsel %vm871, %v861, 0
      %v891 = vsel %vm871, %v862, 0
      %v894 = vsel %vm871, %v863, 0
      %v897 = vsel %vm871, %v864, 0
      %v900 = vsel %vm871, %v865, 0
      %v903 = vsel %vm871, %v866, 0
      %v906 = vsel %vm871, %v867, 0
      %908 = vmatpush.msra.mxu0 0.0
      %909 = vmatpush.msra.mxu0 0.0
      %910 = vmatpush.msra.mxu0 0.0
      %911 = vmatpush.msra.mxu0 0.0
      %912 = vmatpush.msra.mxu0 0.0
      %913 = vmatpush.msra.mxu0 0.0
      %914 = vmatpush.msra.mxu0 0.0
      %915 = vmatpush.msra.mxu0 0.0
      %916 = vmatpush.msra.mxu0 0.0
      %917 = vmatpush.msra.mxu0 0.0
      %918 = vmatpush.msra.mxu0 0.0
      %919 = vmatpush.msra.mxu0 0.0
      %920 = vmatpush.msra.mxu0 0.0
      %921 = vmatpush.msra.mxu0 %v708
      %922 = vmatpush.msra.mxu0 %v707
      %923 = vmatpush.msra.mxu0 %v706
      %924 = vmatmul.f32.gmra.mxu0 %v873
      %v925 = vpop.f32.mrf.mxu0
      %v926 = vadd.f32 %v869, %v925
      %927 = vmatmul.f32.gmra.mxu0 %v876
      %v928 = vpop.f32.mrf.mxu0
      %v929 = vadd.f32 %v869, %v928
      %930 = vmatmul.f32.gmra.mxu0 %v879
      %v931 = vpop.f32.mrf.mxu0
      %v932 = vadd.f32 %v869, %v931
      %933 = vmatmul.f32.gmra.mxu0 %v882
      %v934 = vpop.f32.mrf.mxu0
      %v935 = vadd.f32 %v869, %v934
      %936 = vmatmul.f32.gmra.mxu0 %v885
      %v937 = vpop.f32.mrf.mxu0
      %v938 = vadd.f32 %v869, %v937
      %939 = vmatmul.f32.gmra.mxu0 %v888
      %v940 = vpop.f32.mrf.mxu0
      %v941 = vadd.f32 %v869, %v940
      %942 = vmatmul.f32.gmra.mxu0 %v891
      %v943 = vpop.f32.mrf.mxu0
      %v944 = vadd.f32 %v869, %v943
      %945 = vmatmul.f32.gmra.mxu0 %v894
      %v946 = vpop.f32.mrf.mxu0
      %v947 = vadd.f32 %v869, %v946
      %948 = vmatmul.f32.gmra.mxu0 %v897
      %v949 = vpop.f32.mrf.mxu0
      %v950 = vadd.f32 %v869, %v949
      %951 = vmatmul.f32.gmra.mxu0 %v900
      %v952 = vpop.f32.mrf.mxu0
      %v953 = vadd.f32 %v869, %v952
      %954 = vmatmul.f32.gmra.mxu0 %v903
      %v955 = vpop.f32.mrf.mxu0
      %v956 = vadd.f32 %v869, %v955
      %957 = vmatmul.f32.gmra.mxu0 %v906
      %v958 = vpop.f32.mrf.mxu0
      %v959 = vadd.f32 %v869, %v958
      %960 = vdwg.mxu0
      %v961 = vmax.f32 %v926, 0.0
      %v962 = vmax.f32 %v929, 0.0
      %v963 = vmax.f32 %v932, 0.0
      %v964 = vmax.f32 %v935, 0.0
      %v965 = vmax.f32 %v938, 0.0
      %v966 = vmax.f32 %v941, 0.0
      %v967 = vmax.f32 %v944, 0.0
      %v968 = vmax.f32 %v947, 0.0
      %v969 = vmax.f32 %v950, 0.0
      %v970 = vmax.f32 %v953, 0.0
      %v971 = vmax.f32 %v956, 0.0
      %v972 = vmax.f32 %v959, 0.0
      %vm973 = vcmp.ge.s32.totalorder %v391, 8
      %vm974 = vcmp.ge.s32.totalorder %v392, 8
      %vm975 = vcmp.ge.s32.totalorder %v393, 8
      %vm976 = vmand %vm973, %vm682
      %vm977 = vmand %vm974, %vm683
      %vm978 = vmand %vm975, %vm684
      %v979 = vsel %vm976, 1, 0
      %v980 = vsel %vm977, 1, 0
      %v981 = vsel %vm978, 1, 0
      %vm982 = vcmp.eq.s32.totalorder %v979, 1
      %vm983 = vcmp.eq.s32.totalorder %v980, 1
      %vm984 = vcmp.eq.s32.totalorder %v981, 1
      %v985 = vsel %vm982, %v961, 0.0
      %v986 = vsel %vm983, %v962, 0.0
      %v987 = vsel %vm984, %v963, 0.0
      %v988 = vsel %vm982, %v964, 0.0
      %v989 = vsel %vm983, %v965, 0.0
      %v990 = vsel %vm984, %v966, 0.0
      %v991 = vsel %vm982, %v967, 0.0
      %v992 = vsel %vm983, %v968, 0.0
      %v993 = vsel %vm984, %v969, 0.0
      %v994 = vsel %vm982, %v970, 0.0
      %v995 = vsel %vm983, %v971, 0.0
      %v996 = vsel %vm984, %v972, 0.0
      %v997 = vld [vmem:[%s5] sm:$0xff]
      %v998 = vld [vmem:[%s5 + $0x8] sm:$0xff]
      %v999 = vld [vmem:[%s5 + $0x10] sm:$0xff]
      %v1000 = vld [vmem:[%s6] sm:$0x1]
      %v1013 = vrot.slane %v985, 2
      %v1014 = vrot.slane %v986, 2
      %v1015 = vsel %vm483, %v1013, %v1014
      %v1016 = vrot.slane %v987, 2
      %v1017 = vsel %vm483, %v1014, %v1016
      %v1018 = vrot.slane %v988, 2
      %v1019 = vsel %vm483, %v1016, %v1018
      %v1020 = vrot.slane %v989, 2
      %v1021 = vsel %vm483, %v1018, %v1020
      %v1022 = vrot.slane %v990, 2
      %v1023 = vsel %vm483, %v1020, %v1022
      %v1024 = vrot.slane %v991, 2
      %v1025 = vsel %vm483, %v1022, %v1024
      %v1026 = vrot.slane %v992, 2
      %v1027 = vsel %vm483, %v1024, %v1026
      %v1028 = vrot.slane %v993, 2
      %v1029 = vsel %vm483, %v1026, %v1028
      %v1030 = vrot.slane %v994, 2
      %v1031 = vsel %vm483, %v1028, %v1030
      %v1032 = vrot.slane %v995, 2
      %v1033 = vsel %vm483, %v1030, %v1032
      %v1034 = vrot.slane %v996, 2
      %v1035 = vsel %vm483, %v1032, %v1034
      %v1036 = vsel %vm483, %v1034, %v507
      %1037 = vrot.lane.b32.xlu0 %v1015, 8
      %v1038 = vpop.permute.xlu0 %1037
      %1039 = vrot.lane.b32.xlu0 %v1017, 8
      %v1040 = vpop.permute.xlu0 %1039
      %1041 = vrot.lane.b32.xlu0 %v1019, 8
      %v1042 = vpop.permute.xlu0 %1041
      %1043 = vrot.lane.b32.xlu0 %v1021, 8
      %v1044 = vpop.permute.xlu0 %1043
      %1045 = vrot.lane.b32.xlu0 %v1023, 8
      %v1046 = vpop.permute.xlu0 %1045
      %1047 = vrot.lane.b32.xlu0 %v1025, 8
      %v1048 = vpop.permute.xlu0 %1047
      %1049 = vrot.lane.b32.xlu0 %v1027, 8
      %v1050 = vpop.permute.xlu0 %1049
      %1051 = vrot.lane.b32.xlu0 %v1029, 8
      %v1052 = vpop.permute.xlu0 %1051
      %1053 = vrot.lane.b32.xlu0 %v1031, 8
      %v1054 = vpop.permute.xlu0 %1053
      %1055 = vrot.lane.b32.xlu0 %v1033, 8
      %v1056 = vpop.permute.xlu0 %1055
      %1057 = vrot.lane.b32.xlu0 %v1035, 8
      %v1058 = vpop.permute.xlu0 %1057
      %1059 = vrot.lane.b32.xlu0 %v1036, 8
      %v1060 = vpop.permute.xlu0 %1059
      %vm1073 = vcmask 1043456
      %v1074 = vrot.slane %v985, 4
      %v1075 = vrot.slane %v986, 4
      %v1076 = vsel %vm1073, %v1074, %v1075
      %v1077 = vrot.slane %v987, 4
      %v1078 = vsel %vm1073, %v1075, %v1077
      %v1079 = vrot.slane %v988, 4
      %v1080 = vsel %vm1073, %v1077, %v1079
      %v1081 = vrot.slane %v989, 4
      %v1082 = vsel %vm1073, %v1079, %v1081
      %v1083 = vrot.slane %v990, 4
      %v1084 = vsel %vm1073, %v1081, %v1083
      %v1085 = vrot.slane %v991, 4
      %v1086 = vsel %vm1073, %v1083, %v1085
      %v1087 = vrot.slane %v992, 4
      %v1088 = vsel %vm1073, %v1085, %v1087
      %v1089 = vrot.slane %v993, 4
      %v1090 = vsel %vm1073, %v1087, %v1089
      %v1091 = vrot.slane %v994, 4
      %v1092 = vsel %vm1073, %v1089, %v1091
      %v1093 = vrot.slane %v995, 4
      %v1094 = vsel %vm1073, %v1091, %v1093
      %v1095 = vrot.slane %v996, 4
      %v1096 = vsel %vm1073, %v1093, %v1095
      %v1097 = vrot.slane 0.0, 4
      %v1098 = vsel %vm1073, %v1095, %v1097
      %1099 = vrot.lane.b32.xlu0 %v1076, 16
      %v1100 = vpop.permute.xlu0 %1099
      %1101 = vrot.lane.b32.xlu0 %v1078, 16
      %v1102 = vpop.permute.xlu0 %1101
      %1103 = vrot.lane.b32.xlu0 %v1080, 16
      %v1104 = vpop.permute.xlu0 %1103
      %1105 = vrot.lane.b32.xlu0 %v1082, 16
      %v1106 = vpop.permute.xlu0 %1105
      %1107 = vrot.lane.b32.xlu0 %v1084, 16
      %v1108 = vpop.permute.xlu0 %1107
      %1109 = vrot.lane.b32.xlu0 %v1086, 16
      %v1110 = vpop.permute.xlu0 %1109
      %1111 = vrot.lane.b32.xlu0 %v1088, 16
      %v1112 = vpop.permute.xlu0 %1111
      %1113 = vrot.lane.b32.xlu0 %v1090, 16
      %v1114 = vpop.permute.xlu0 %1113
      %1115 = vrot.lane.b32.xlu0 %v1092, 16
      %v1116 = vpop.permute.xlu0 %1115
      %1117 = vrot.lane.b32.xlu0 %v1094, 16
      %v1118 = vpop.permute.xlu0 %1117
      %1119 = vrot.lane.b32.xlu0 %v1096, 16
      %v1120 = vpop.permute.xlu0 %1119
      %1121 = vrot.lane.b32.xlu0 %v1098, 16
      %v1122 = vpop.permute.xlu0 %1121
      %v1135 = vsel %vm842, %v985, %v1038
      %v1136 = vsel %vm842, %v986, %v1040
      %v1137 = vsel %vm842, %v987, %v1042
      %v1138 = vsel %vm842, %v988, %v1044
      %v1139 = vsel %vm842, %v989, %v1046
      %v1140 = vsel %vm842, %v990, %v1048
      %v1141 = vsel %vm842, %v991, %v1050
      %v1142 = vsel %vm842, %v992, %v1052
      %v1143 = vsel %vm842, %v993, %v1054
      %v1144 = vsel %vm842, %v994, %v1056
      %v1145 = vsel %vm842, %v995, %v1058
      %v1146 = vsel %vm842, %v996, %v1060
      %v1147 = vsel %vm855, %v1135, %v1100
      %v1148 = vsel %vm855, %v1136, %v1102
      %v1149 = vsel %vm855, %v1137, %v1104
      %v1150 = vsel %vm855, %v1138, %v1106
      %v1151 = vsel %vm855, %v1139, %v1108
      %v1152 = vsel %vm855, %v1140, %v1110
      %v1153 = vsel %vm855, %v1141, %v1112
      %v1154 = vsel %vm855, %v1142, %v1114
      %v1155 = vsel %vm855, %v1143, %v1116
      %v1156 = vsel %vm855, %v1144, %v1118
      %v1157 = vsel %vm855, %v1145, %v1120
      %v1158 = vsel %vm855, %v1146, %v1122
      %v1160 = vperm.slane %v1000, 0
      %v1163 = vsel %vm871, %v1147, 0
      %v1166 = vsel %vm871, %v1148, 0
      %v1169 = vsel %vm871, %v1149, 0
      %v1172 = vsel %vm871, %v1150, 0
      %v1175 = vsel %vm871, %v1151, 0
      %v1178 = vsel %vm871, %v1152, 0
      %v1181 = vsel %vm871, %v1153, 0
      %v1184 = vsel %vm871, %v1154, 0
      %v1187 = vsel %vm871, %v1155, 0
      %v1190 = vsel %vm871, %v1156, 0
      %v1193 = vsel %vm871, %v1157, 0
      %v1196 = vsel %vm871, %v1158, 0
      %1198 = vmatpush.msra.mxu0 0.0
      %1199 = vmatpush.msra.mxu0 0.0
      %1200 = vmatpush.msra.mxu0 0.0
      %1201 = vmatpush.msra.mxu0 0.0
      %1202 = vmatpush.msra.mxu0 0.0
      %1203 = vmatpush.msra.mxu0 0.0
      %1204 = vmatpush.msra.mxu0 0.0
      %1205 = vmatpush.msra.mxu0 0.0
      %1206 = vmatpush.msra.mxu0 0.0
      %1207 = vmatpush.msra.mxu0 0.0
      %1208 = vmatpush.msra.mxu0 0.0
      %1209 = vmatpush.msra.mxu0 0.0
      %1210 = vmatpush.msra.mxu0 0.0
      %1211 = vmatpush.msra.mxu0 %v999
      %1212 = vmatpush.msra.mxu0 %v998
      %1213 = vmatpush.msra.mxu0 %v997
      %1214 = vmatmul.f32.gmra.mxu0 %v1163
      %v1215 = vpop.f32.mrf.mxu0
      %v1216 = vadd.f32 %v1160, %v1215
      %1217 = vmatmul.f32.gmra.mxu0 %v1166
      %v1218 = vpop.f32.mrf.mxu0
      %v1219 = vadd.f32 %v1160, %v1218
      %1220 = vmatmul.f32.gmra.mxu0 %v1169
      %v1221 = vpop.f32.mrf.mxu0
      %v1222 = vadd.f32 %v1160, %v1221
      %1223 = vmatmul.f32.gmra.mxu0 %v1172
      %v1224 = vpop.f32.mrf.mxu0
      %v1225 = vadd.f32 %v1160, %v1224
      %1226 = vmatmul.f32.gmra.mxu0 %v1175
      %v1227 = vpop.f32.mrf.mxu0
      %v1228 = vadd.f32 %v1160, %v1227
      %1229 = vmatmul.f32.gmra.mxu0 %v1178
      %v1230 = vpop.f32.mrf.mxu0
      %v1231 = vadd.f32 %v1160, %v1230
      %1232 = vmatmul.f32.gmra.mxu0 %v1181
      %v1233 = vpop.f32.mrf.mxu0
      %v1234 = vadd.f32 %v1160, %v1233
      %1235 = vmatmul.f32.gmra.mxu0 %v1184
      %v1236 = vpop.f32.mrf.mxu0
      %v1237 = vadd.f32 %v1160, %v1236
      %1238 = vmatmul.f32.gmra.mxu0 %v1187
      %v1239 = vpop.f32.mrf.mxu0
      %v1240 = vadd.f32 %v1160, %v1239
      %1241 = vmatmul.f32.gmra.mxu0 %v1190
      %v1242 = vpop.f32.mrf.mxu0
      %v1243 = vadd.f32 %v1160, %v1242
      %1244 = vmatmul.f32.gmra.mxu0 %v1193
      %v1245 = vpop.f32.mrf.mxu0
      %v1246 = vadd.f32 %v1160, %v1245
      %1247 = vmatmul.f32.gmra.mxu0 %v1196
      %v1248 = vpop.f32.mrf.mxu0
      %v1249 = vadd.f32 %v1160, %v1248
      %1250 = vdwg.mxu0
      %v1251 = vmax.f32 %v1216, 0.0
      %v1252 = vmax.f32 %v1219, 0.0
      %v1253 = vmax.f32 %v1222, 0.0
      %v1254 = vmax.f32 %v1225, 0.0
      %v1255 = vmax.f32 %v1228, 0.0
      %v1256 = vmax.f32 %v1231, 0.0
      %v1257 = vmax.f32 %v1234, 0.0
      %v1258 = vmax.f32 %v1237, 0.0
      %v1259 = vmax.f32 %v1240, 0.0
      %v1260 = vmax.f32 %v1243, 0.0
      %v1261 = vmax.f32 %v1246, 0.0
      %v1262 = vmax.f32 %v1249, 0.0
      %vm1263 = vcmp.ge.s32.totalorder %v391, 4
      %vm1264 = vcmp.ge.s32.totalorder %v392, 4
      %vm1265 = vcmp.ge.s32.totalorder %v393, 4
      %vm1266 = vmand %vm1263, %vm682
      %vm1267 = vmand %vm1264, %vm683
      %vm1268 = vmand %vm1265, %vm684
      %v1269 = vsel %vm1266, 1, 0
      %v1270 = vsel %vm1267, 1, 0
      %v1271 = vsel %vm1268, 1, 0
      %vm1272 = vcmp.eq.s32.totalorder %v1269, 1
      %vm1273 = vcmp.eq.s32.totalorder %v1270, 1
      %vm1274 = vcmp.eq.s32.totalorder %v1271, 1
      %v1275 = vsel %vm1272, %v1251, 0.0
      %v1276 = vsel %vm1273, %v1252, 0.0
      %v1277 = vsel %vm1274, %v1253, 0.0
      %v1278 = vsel %vm1272, %v1254, 0.0
      %v1279 = vsel %vm1273, %v1255, 0.0
      %v1280 = vsel %vm1274, %v1256, 0.0
      %v1281 = vsel %vm1272, %v1257, 0.0
      %v1282 = vsel %vm1273, %v1258, 0.0
      %v1283 = vsel %vm1274, %v1259, 0.0
      %v1284 = vsel %vm1272, %v1260, 0.0
      %v1285 = vsel %vm1273, %v1261, 0.0
      %v1286 = vsel %vm1274, %v1262, 0.0
      %v1287 = vld [vmem:[%s7] sm:$0xff]
      %v1288 = vld [vmem:[%s7 + $0x8] sm:$0xff]
      %v1289 = vld [vmem:[%s7 + $0x10] sm:$0xff]
      %v1290 = vld [vmem:[%s8] sm:$0x1]
      %v1303 = vrot.slane %v1275, 2
      %v1304 = vrot.slane %v1276, 2
      %v1305 = vsel %vm483, %v1303, %v1304
      %v1306 = vrot.slane %v1277, 2
      %v1307 = vsel %vm483, %v1304, %v1306
      %v1308 = vrot.slane %v1278, 2
      %v1309 = vsel %vm483, %v1306, %v1308
      %v1310 = vrot.slane %v1279, 2
      %v1311 = vsel %vm483, %v1308, %v1310
      %v1312 = vrot.slane %v1280, 2
      %v1313 = vsel %vm483, %v1310, %v1312
      %v1314 = vrot.slane %v1281, 2
      %v1315 = vsel %vm483, %v1312, %v1314
      %v1316 = vrot.slane %v1282, 2
      %v1317 = vsel %vm483, %v1314, %v1316
      %v1318 = vrot.slane %v1283, 2
      %v1319 = vsel %vm483, %v1316, %v1318
      %v1320 = vrot.slane %v1284, 2
      %v1321 = vsel %vm483, %v1318, %v1320
      %v1322 = vrot.slane %v1285, 2
      %v1323 = vsel %vm483, %v1320, %v1322
      %v1324 = vrot.slane %v1286, 2
      %v1325 = vsel %vm483, %v1322, %v1324
      %v1326 = vsel %vm483, %v1324, %v507
      %1327 = vrot.lane.b32.xlu0 %v1305, 8
      %v1328 = vpop.permute.xlu0 %1327
      %1329 = vrot.lane.b32.xlu0 %v1307, 8
      %v1330 = vpop.permute.xlu0 %1329
      %1331 = vrot.lane.b32.xlu0 %v1309, 8
      %v1332 = vpop.permute.xlu0 %1331
      %1333 = vrot.lane.b32.xlu0 %v1311, 8
      %v1334 = vpop.permute.xlu0 %1333
      %1335 = vrot.lane.b32.xlu0 %v1313, 8
      %v1336 = vpop.permute.xlu0 %1335
      %1337 = vrot.lane.b32.xlu0 %v1315, 8
      %v1338 = vpop.permute.xlu0 %1337
      %1339 = vrot.lane.b32.xlu0 %v1317, 8
      %v1340 = vpop.permute.xlu0 %1339
      %1341 = vrot.lane.b32.xlu0 %v1319, 8
      %v1342 = vpop.permute.xlu0 %1341
      %1343 = vrot.lane.b32.xlu0 %v1321, 8
      %v1344 = vpop.permute.xlu0 %1343
      %1345 = vrot.lane.b32.xlu0 %v1323, 8
      %v1346 = vpop.permute.xlu0 %1345
      %1347 = vrot.lane.b32.xlu0 %v1325, 8
      %v1348 = vpop.permute.xlu0 %1347
      %1349 = vrot.lane.b32.xlu0 %v1326, 8
      %v1350 = vpop.permute.xlu0 %1349
      %v1363 = vrot.slane %v1275, 4
      %v1364 = vrot.slane %v1276, 4
      %v1365 = vsel %vm1073, %v1363, %v1364
      %v1366 = vrot.slane %v1277, 4
      %v1367 = vsel %vm1073, %v1364, %v1366
      %v1368 = vrot.slane %v1278, 4
      %v1369 = vsel %vm1073, %v1366, %v1368
      %v1370 = vrot.slane %v1279, 4
      %v1371 = vsel %vm1073, %v1368, %v1370
      %v1372 = vrot.slane %v1280, 4
      %v1373 = vsel %vm1073, %v1370, %v1372
      %v1374 = vrot.slane %v1281, 4
      %v1375 = vsel %vm1073, %v1372, %v1374
      %v1376 = vrot.slane %v1282, 4
      %v1377 = vsel %vm1073, %v1374, %v1376
      %v1378 = vrot.slane %v1283, 4
      %v1379 = vsel %vm1073, %v1376, %v1378
      %v1380 = vrot.slane %v1284, 4
      %v1381 = vsel %vm1073, %v1378, %v1380
      %v1382 = vrot.slane %v1285, 4
      %v1383 = vsel %vm1073, %v1380, %v1382
      %v1384 = vrot.slane %v1286, 4
      %v1385 = vsel %vm1073, %v1382, %v1384
      %v1386 = vsel %vm1073, %v1384, %v1097
      %1387 = vrot.lane.b32.xlu0 %v1365, 16
      %v1388 = vpop.permute.xlu0 %1387
      %1389 = vrot.lane.b32.xlu0 %v1367, 16
      %v1390 = vpop.permute.xlu0 %1389
      %1391 = vrot.lane.b32.xlu0 %v1369, 16
      %v1392 = vpop.permute.xlu0 %1391
      %1393 = vrot.lane.b32.xlu0 %v1371, 16
      %v1394 = vpop.permute.xlu0 %1393
      %1395 = vrot.lane.b32.xlu0 %v1373, 16
      %v1396 = vpop.permute.xlu0 %1395
      %1397 = vrot.lane.b32.xlu0 %v1375, 16
      %v1398 = vpop.permute.xlu0 %1397
      %1399 = vrot.lane.b32.xlu0 %v1377, 16
      %v1400 = vpop.permute.xlu0 %1399
      %1401 = vrot.lane.b32.xlu0 %v1379, 16
      %v1402 = vpop.permute.xlu0 %1401
      %1403 = vrot.lane.b32.xlu0 %v1381, 16
      %v1404 = vpop.permute.xlu0 %1403
      %1405 = vrot.lane.b32.xlu0 %v1383, 16
      %v1406 = vpop.permute.xlu0 %1405
      %1407 = vrot.lane.b32.xlu0 %v1385, 16
      %v1408 = vpop.permute.xlu0 %1407
      %1409 = vrot.lane.b32.xlu0 %v1386, 16
      %v1410 = vpop.permute.xlu0 %1409
      %v1423 = vsel %vm842, %v1275, %v1328
      %v1424 = vsel %vm842, %v1276, %v1330
      %v1425 = vsel %vm842, %v1277, %v1332
      %v1426 = vsel %vm842, %v1278, %v1334
      %v1427 = vsel %vm842, %v1279, %v1336
      %v1428 = vsel %vm842, %v1280, %v1338
      %v1429 = vsel %vm842, %v1281, %v1340
      %v1430 = vsel %vm842, %v1282, %v1342
      %v1431 = vsel %vm842, %v1283, %v1344
      %v1432 = vsel %vm842, %v1284, %v1346
      %v1433 = vsel %vm842, %v1285, %v1348
      %v1434 = vsel %vm842, %v1286, %v1350
      %v1435 = vsel %vm855, %v1423, %v1388
      %v1436 = vsel %vm855, %v1424, %v1390
      %v1437 = vsel %vm855, %v1425, %v1392
      %v1438 = vsel %vm855, %v1426, %v1394
      %v1439 = vsel %vm855, %v1427, %v1396
      %v1440 = vsel %vm855, %v1428, %v1398
      %v1441 = vsel %vm855, %v1429, %v1400
      %v1442 = vsel %vm855, %v1430, %v1402
      %v1443 = vsel %vm855, %v1431, %v1404
      %v1444 = vsel %vm855, %v1432, %v1406
      %v1445 = vsel %vm855, %v1433, %v1408
      %v1446 = vsel %vm855, %v1434, %v1410
      %v1448 = vperm.slane %v1290, 0
      %v1451 = vsel %vm871, %v1435, 0
      %v1454 = vsel %vm871, %v1436, 0
      %v1457 = vsel %vm871, %v1437, 0
      %v1460 = vsel %vm871, %v1438, 0
      %v1463 = vsel %vm871, %v1439, 0
      %v1466 = vsel %vm871, %v1440, 0
      %v1469 = vsel %vm871, %v1441, 0
      %v1472 = vsel %vm871, %v1442, 0
      %v1475 = vsel %vm871, %v1443, 0
      %v1478 = vsel %vm871, %v1444, 0
      %v1481 = vsel %vm871, %v1445, 0
      %v1484 = vsel %vm871, %v1446, 0
      %1486 = vmatpush.msra.mxu0 0.0
      %1487 = vmatpush.msra.mxu0 0.0
      %1488 = vmatpush.msra.mxu0 0.0
      %1489 = vmatpush.msra.mxu0 0.0
      %1490 = vmatpush.msra.mxu0 0.0
      %1491 = vmatpush.msra.mxu0 0.0
      %1492 = vmatpush.msra.mxu0 0.0
      %1493 = vmatpush.msra.mxu0 0.0
      %1494 = vmatpush.msra.mxu0 0.0
      %1495 = vmatpush.msra.mxu0 0.0
      %1496 = vmatpush.msra.mxu0 0.0
      %1497 = vmatpush.msra.mxu0 0.0
      %1498 = vmatpush.msra.mxu0 0.0
      %1499 = vmatpush.msra.mxu0 %v1289
      %1500 = vmatpush.msra.mxu0 %v1288
      %1501 = vmatpush.msra.mxu0 %v1287
      %1502 = vmatmul.f32.gmra.mxu0 %v1451
      %v1503 = vpop.f32.mrf.mxu0
      %v1504 = vadd.f32 %v1448, %v1503
      %1505 = vmatmul.f32.gmra.mxu0 %v1454
      %v1506 = vpop.f32.mrf.mxu0
      %v1507 = vadd.f32 %v1448, %v1506
      %1508 = vmatmul.f32.gmra.mxu0 %v1457
      %v1509 = vpop.f32.mrf.mxu0
      %v1510 = vadd.f32 %v1448, %v1509
      %1511 = vmatmul.f32.gmra.mxu0 %v1460
      %v1512 = vpop.f32.mrf.mxu0
      %v1513 = vadd.f32 %v1448, %v1512
      %1514 = vmatmul.f32.gmra.mxu0 %v1463
      %v1515 = vpop.f32.mrf.mxu0
      %v1516 = vadd.f32 %v1448, %v1515
      %1517 = vmatmul.f32.gmra.mxu0 %v1466
      %v1518 = vpop.f32.mrf.mxu0
      %v1519 = vadd.f32 %v1448, %v1518
      %1520 = vmatmul.f32.gmra.mxu0 %v1469
      %v1521 = vpop.f32.mrf.mxu0
      %v1522 = vadd.f32 %v1448, %v1521
      %1523 = vmatmul.f32.gmra.mxu0 %v1472
      %v1524 = vpop.f32.mrf.mxu0
      %v1525 = vadd.f32 %v1448, %v1524
      %1526 = vmatmul.f32.gmra.mxu0 %v1475
      %v1527 = vpop.f32.mrf.mxu0
      %v1528 = vadd.f32 %v1448, %v1527
      %1529 = vmatmul.f32.gmra.mxu0 %v1478
      %v1530 = vpop.f32.mrf.mxu0
      %v1531 = vadd.f32 %v1448, %v1530
      %1532 = vmatmul.f32.gmra.mxu0 %v1481
      %v1533 = vpop.f32.mrf.mxu0
      %v1534 = vadd.f32 %v1448, %v1533
      %1535 = vmatmul.f32.gmra.mxu0 %v1484
      %v1536 = vpop.f32.mrf.mxu0
      %v1537 = vadd.f32 %v1448, %v1536
      %1538 = vdwg.mxu0
      %v1539 = vmax.f32 %v1504, 0.0
      %v1540 = vmax.f32 %v1507, 0.0
      %v1541 = vmax.f32 %v1510, 0.0
      %v1542 = vmax.f32 %v1513, 0.0
      %v1543 = vmax.f32 %v1516, 0.0
      %v1544 = vmax.f32 %v1519, 0.0
      %v1545 = vmax.f32 %v1522, 0.0
      %v1546 = vmax.f32 %v1525, 0.0
      %v1547 = vmax.f32 %v1528, 0.0
      %v1548 = vmax.f32 %v1531, 0.0
      %v1549 = vmax.f32 %v1534, 0.0
      %v1550 = vmax.f32 %v1537, 0.0
      %vm1551 = vcmp.ge.s32.totalorder %v391, 0
      %vm1552 = vcmp.ge.s32.totalorder %v392, 0
      %vm1553 = vcmp.ge.s32.totalorder %v393, 0
      %vm1554 = vmand %vm1551, %vm682
      %vm1555 = vmand %vm1552, %vm683
      %vm1556 = vmand %vm1553, %vm684
      %v1557 = vsel %vm1554, 1, 0
      %v1558 = vsel %vm1555, 1, 0
      %v1559 = vsel %vm1556, 1, 0
      %vm1560 = vcmp.eq.s32.totalorder %v1557, 1
      %vm1561 = vcmp.eq.s32.totalorder %v1558, 1
      %vm1562 = vcmp.eq.s32.totalorder %v1559, 1
      %v1563 = vsel %vm1560, %v1539, 0.0
      %v1564 = vsel %vm1561, %v1540, 0.0
      %v1565 = vsel %vm1562, %v1541, 0.0
      %v1566 = vsel %vm1560, %v1542, 0.0
      %v1567 = vsel %vm1561, %v1543, 0.0
      %v1568 = vsel %vm1562, %v1544, 0.0
      %v1569 = vsel %vm1560, %v1545, 0.0
      %v1570 = vsel %vm1561, %v1546, 0.0
      %v1571 = vsel %vm1562, %v1547, 0.0
      %v1572 = vsel %vm1560, %v1548, 0.0
      %v1573 = vsel %vm1561, %v1549, 0.0
      %v1574 = vsel %vm1562, %v1550, 0.0
      %v1575 = vld [vmem:[%s9] sm:$0x7]
      %v1576 = vld [vmem:[%s10] sm:$0x7]
      %1578 = vset.pattern.permute.xlu0 0
      %1579 = vperm.xlu0 %1578, %v1576
      %v1580 = vpop.permute.xlu0 %1579
      %v1583 = vsel %vm871, %v1575, 0
      %1585 = vmatpush.msra.mxu0 0.0
      %1586 = vmatpush.msra.mxu0 0.0
      %1587 = vmatpush.msra.mxu0 0.0
      %1588 = vmatpush.msra.mxu0 0.0
      %1589 = vmatpush.msra.mxu0 0.0
      %1590 = vmatpush.msra.mxu0 0.0
      %1591 = vmatpush.msra.mxu0 0.0
      %1592 = vmatpush.msra.mxu0 0.0
      %1593 = vmatpush.msra.mxu0 0.0
      %1594 = vmatpush.msra.mxu0 0.0
      %1595 = vmatpush.msra.mxu0 0.0
      %1596 = vmatpush.msra.mxu0 0.0
      %1597 = vmatpush.msra.mxu0 0.0
      %1598 = vmatpush.msra.mxu0 %v1565
      %1599 = vmatpush.msra.mxu0 %v1564
      %1600 = vmatpush.msra.mxu0 %v1563
      %1601 = vmatmul.f32.gmra.mxu0 %v1583
      %v1602 = vpop.f32.mrf.mxu0
      %v1603 = vadd.f32 %v1580, %v1602
      %1604 = vdwg.mxu0
      %1605 = vmatpush.msra.mxu0 0.0
      %1606 = vmatpush.msra.mxu0 0.0
      %1607 = vmatpush.msra.mxu0 0.0
      %1608 = vmatpush.msra.mxu0 0.0
      %1609 = vmatpush.msra.mxu0 0.0
      %1610 = vmatpush.msra.mxu0 0.0
      %1611 = vmatpush.msra.mxu0 0.0
      %1612 = vmatpush.msra.mxu0 0.0
      %1613 = vmatpush.msra.mxu0 0.0
      %1614 = vmatpush.msra.mxu0 0.0
      %1615 = vmatpush.msra.mxu0 0.0
      %1616 = vmatpush.msra.mxu0 0.0
      %1617 = vmatpush.msra.mxu0 0.0
      %1618 = vmatpush.msra.mxu0 %v1568
      %1619 = vmatpush.msra.mxu0 %v1567
      %1620 = vmatpush.msra.mxu0 %v1566
      %1621 = vmatmul.f32.gmra.mxu0 %v1583
      %v1622 = vpop.f32.mrf.mxu0
      %v1623 = vadd.f32 %v1580, %v1622
      %1624 = vdwg.mxu0
      %1625 = vmatpush.msra.mxu0 0.0
      %1626 = vmatpush.msra.mxu0 0.0
      %1627 = vmatpush.msra.mxu0 0.0
      %1628 = vmatpush.msra.mxu0 0.0
      %1629 = vmatpush.msra.mxu0 0.0
      %1630 = vmatpush.msra.mxu0 0.0
      %1631 = vmatpush.msra.mxu0 0.0
      %1632 = vmatpush.msra.mxu0 0.0
      %1633 = vmatpush.msra.mxu0 0.0
      %1634 = vmatpush.msra.mxu0 0.0
      %1635 = vmatpush.msra.mxu0 0.0
      %1636 = vmatpush.msra.mxu0 0.0
      %1637 = vmatpush.msra.mxu0 0.0
      %1638 = vmatpush.msra.mxu0 %v1571
      %1639 = vmatpush.msra.mxu0 %v1570
      %1640 = vmatpush.msra.mxu0 %v1569
      %1641 = vmatmul.f32.gmra.mxu0 %v1583
      %v1642 = vpop.f32.mrf.mxu0
      %v1643 = vadd.f32 %v1580, %v1642
      %1644 = vdwg.mxu0
      %1645 = vmatpush.msra.mxu0 0.0
      %1646 = vmatpush.msra.mxu0 0.0
      %1647 = vmatpush.msra.mxu0 0.0
      %1648 = vmatpush.msra.mxu0 0.0
      %1649 = vmatpush.msra.mxu0 0.0
      %1650 = vmatpush.msra.mxu0 0.0
      %1651 = vmatpush.msra.mxu0 0.0
      %1652 = vmatpush.msra.mxu0 0.0
      %1653 = vmatpush.msra.mxu0 0.0
      %1654 = vmatpush.msra.mxu0 0.0
      %1655 = vmatpush.msra.mxu0 0.0
      %1656 = vmatpush.msra.mxu0 0.0
      %1657 = vmatpush.msra.mxu0 0.0
      %1658 = vmatpush.msra.mxu0 %v1574
      %1659 = vmatpush.msra.mxu0 %v1573
      %1660 = vmatpush.msra.mxu0 %v1572
      %1661 = vmatmul.f32.gmra.mxu0 %v1583
      %v1662 = vpop.f32.mrf.mxu0
      %v1663 = vadd.f32 %v1580, %v1662
      %1664 = vdwg.mxu0
      %vm1665 = vcmask 59392
      %1666 = vst.msk [vmem:[%s388] sm:$0x7] %vm1665, %v1603
      %1667 = vst.msk [vmem:[%s388 + $0x4] sm:$0x7] %vm1665, %v1623
      %1668 = vst.msk [vmem:[%s388 + $0x8] sm:$0x7] %vm1665, %v1643
      %1669 = vst.msk [vmem:[%s388 + $0xc] sm:$0x7] %vm1665, %v1663
      %s1670 = smul.u32 4, %s22
      %p1671 = scmp.lt.s32.totalorder %s1670, 7
      %s1672 = scalar_select %p1671, %s1670, 7
      %s1673 = smul.addr %s1672, 4
      %s1674 = scalar_lea.vmem %s11, %s1673
      // Predicated region
      $region65: #{tpu_custom_call.1} parent=63 // pred_check
        %p1675 = pneg %p276
      $region66: #{tpu_custom_call.1} parent=63 // pred_check_branch
        %1677 = sbr.rel (%p1675) target = $region68
      $region67: #{tpu_custom_call.1} parent=63 // pred_region
        %s1678 = smul.u32 4, %s22
      $region68: #{tpu_custom_call.1} parent=63 // pred_fallthru
        _
    $region64: #{tpu_custom_call.1} parent=5 // pred_fallthru
      _
    %p1679 = scmp.le.s32.totalorder 2, %s17
    // Predicated region
    $region69: #{tpu_custom_call.1} parent=5 // pred_check
      %p1680 = pneg %p1679
    $region70: #{tpu_custom_call.1} parent=5 // pred_check_branch
      %1682 = sbr.rel (%p1680) target = $region72
    $region71: #{tpu_custom_call.1} parent=5 // pred_region
      %s1683 = ssub.s32 %s17, 2
      // Predicated region
      $region73: #{tpu_custom_call.1} parent=71 // pred_check
        %p1684 = pneg %p282
      $region74: #{tpu_custom_call.1} parent=71 // pred_check_branch
        %1686 = sbr.rel (%p1684) target = $region76
      $region75: #{tpu_custom_call.1} parent=71 // pred_region
        %s1687 = smul.u32 4, %s23
        %p1688 = scmp.lt.s32.totalorder %s1687, 7
        %s1689 = scalar_select %p1688, %s1687, 7
        %s1690 = smul.addr %s1689, 4
        %s1691 = scalar_lea.vmem %s11, %s1690
      $region76: #{tpu_custom_call.1} parent=71 // pred_fallthru
        _
    $region72: #{tpu_custom_call.1} parent=5 // pred_fallthru
      _
  $region6: #{tpu_custom_call.1} parent=0 // loop_footer
    %s21 = sadd.s32 1, %s17
  $region7: #{tpu_custom_call.1} parent=0 // loop_footer_branch
    %16 = sbr.rel target = $region3
  $region8: #{tpu_custom_call.1} parent=0 // loop_exit
    _

</llo_original>
